<compile_context>
chip_gen: v5e
topology: v5e:2x2
jax: 0.10.0
libtpu: 0.0.40
codegen_flags: <defaults>
</compile_context>

<pallas_src>
import jax
import jax.numpy as jnp
from jax.experimental import pallas as pl
from jax.experimental.pallas import tpu as pltpu

EPS = 1e-12


# ---------------- kernel 1: batched fft2 + fftshift + log|.| (single grid step) ----------------
def _dft_kernel(x_ref, f_ref, gr_ref, gi_ref, o_ref):
    h = f_ref.shape[1]                                                    # H
    x = x_ref[...]                                                        # (H, L) images side by side
    a = jnp.dot(f_ref[...], x, preferred_element_type=jnp.float32)       # (2H, L) = [Fr@X ; Fi@X]
    p = jnp.dot(a, gr_ref[...], preferred_element_type=jnp.float32)      # (2H, L) = [Ar@Grt ; Ai@Grt]
    q = jnp.dot(a, gi_ref[...], preferred_element_type=jnp.float32)      # (2H, L) = [Ar@Git ; Ai@Git]
    yr = p[:h, :] - q[h:, :]
    yi = q[:h, :] + p[h:, :]
    mag = jnp.sqrt(yr * yr + yi * yi) + EPS
    o_ref[...] = jnp.log(mag)                                             # lane-dense (H, L) slab


def dft_pallas(x_cat, f_stack, g_bd_r, g_bd_i):
    H, L = x_cat.shape
    # No grid: whole (tiny) operands live in VMEM for the single invocation.
    return pl.pallas_call(
        _dft_kernel,
        out_shape=jax.ShapeDtypeStruct((H, L), jnp.float32),
    )(x_cat, f_stack, g_bd_r, g_bd_i)


# -------- kernel 2: fused feature branches (3x3 conv + ReLU + global avg pool) + fc --------
# TODO(synk): resnet.resnetlayer34 is an external, undefined backbone; replaced by a single
# 3x3 conv (C -> 512) + ReLU stand-in per branch so the 512+512 -> fc(1024, num_classes)
# shapes hold.
def _branch_fc_kernel(p_ref, w_ref, b_ref, wfc_ref, bfc_ref, o_ref):
    s = pl.program_id(1)                                                  # 0 = src(x), 1 = tgt(y)
    p = p_ref[0, 0]                                                       # (HW, C*9)
    h = jnp.dot(p, w_ref[0], preferred_element_type=jnp.float32) + b_ref[0]
    h = jnp.maximum(h, 0.0)                                               # (HW, F)
    feat = jnp.mean(h, axis=0, keepdims=True)                             # (1, F)  AdaptiveAvgPool2d((1,1))
    partial = jnp.dot(feat, wfc_ref[0], preferred_element_type=jnp.float32)  # (1, NC) fc partial

    @pl.when(s == 0)
    def _():
        o_ref[0] = bfc_ref[...]                                           # init resident accumulator
    o_ref[0] = o_ref[0] + partial


def branch_fc_pallas(patches, w_all, b_all, wfc_all, b_fc):
    S, N, HW, CK = patches.shape
    F = w_all.shape[-1]
    NC = wfc_all.shape[-1]
    out = pl.pallas_call(
        _branch_fc_kernel,
        out_shape=jax.ShapeDtypeStruct((N, 1, NC), jnp.float32),
        grid=(N, S),                                                       # branch axis last (reduction)
        in_specs=[
            pl.BlockSpec((1, 1, HW, CK), lambda n, s: (s, n, 0, 0)),
            pl.BlockSpec((1, CK, F), lambda n, s: (s, 0, 0)),
            pl.BlockSpec((1, 1, F), lambda n, s: (s, 0, 0)),
            pl.BlockSpec((1, F, NC), lambda n, s: (s, 0, 0)),
            pl.BlockSpec((1, NC), lambda n, s: (0, 0)),
        ],
        out_specs=pl.BlockSpec((1, 1, NC), lambda n, s: (n, 0, 0)),
        compiler_params=pltpu.CompilerParams(
            dimension_semantics=("parallel", "arbitrary")),
    )(patches, w_all, b_all, wfc_all, b_fc)
    return out[:, 0, :]


# ----------------------------------------- glue -----------------------------------------
def make_shifted_dft_matrices(n):
    """Orthonormal 1D DFT matrix with fftshift baked into the output (row) index."""
    k = jnp.arange(n, dtype=jnp.float32)
    km = jnp.remainder(jnp.outer(k, k), n)            # keep angles small for f32 accuracy
    ang = -2.0 * jnp.pi * km / n
    scale = 1.0 / jnp.sqrt(jnp.float32(n))
    fr = jnp.roll(jnp.cos(ang) * scale, n // 2, axis=0)
    fi = jnp.roll(jnp.sin(ang) * scale, n // 2, axis=0)
    return fr, fi


def block_diag_pad(block, num, size):
    """num copies of `block` on the diagonal of a (size, size) zero matrix."""
    w = block.shape[0]
    m = jnp.zeros((size, size), jnp.float32)
    for b in range(num):
        m = m.at[b * w:(b + 1) * w, b * w:(b + 1) * w].set(block)
    return m


def im2col_3x3(x):
    """(N, C, H, W) -> (N, H*W, C*9), stride 1, padding 1 ('SAME')."""
    N, C, H, W = x.shape
    xp = jnp.pad(x, ((0, 0), (0, 0), (1, 1), (1, 1)))
    cols = [xp[:, :, i:i + H, j:j + W] for i in range(3) for j in range(3)]
    p = jnp.stack(cols, axis=2)            # (N, C, 9, H, W)
    p = p.transpose(0, 3, 4, 1, 2)         # (N, H, W, C, 9)
    return p.reshape(N, H * W, C * 9)


def concat_network_forward(x, params):
    N, C, H, W = x.shape
    B = N * C
    L = params["g_bd_r"].shape[0]
    x = x.astype(jnp.float32)

    # --- y = dft(x) ---
    # torch.fft.fftshift with default dim shifts ALL dims; the batch/channel shift is folded
    # into a roll of the input (per-image DFT+log|.| ignores position), the spatial shift is
    # baked into the DFT matrices.
    x_sh = jnp.roll(x, (N // 2, C // 2), axis=(0, 1))
    x_cat = x_sh.reshape(B, H, W).transpose(1, 0, 2).reshape(H, B * W)     # images along lanes
    x_cat = jnp.pad(x_cat, ((0, 0), (0, L - B * W)))                       # lane-pad to 128

    d = dft_pallas(x_cat, params["f_stack"], params["g_bd_r"], params["g_bd_i"])  # (H, L)
    y = d[:, :B * W].reshape(H, B, W).transpose(1, 0, 2).reshape(N, C, H, W)

    # --- x = src(x); y = tgt(y); avgpool; cat; flatten; fc ---
    patches = jnp.stack([im2col_3x3(x), im2col_3x3(y)], axis=0)            # (2, N, HW, C*9)
    return branch_fc_pallas(patches, params["w_all"], params["b_all"],
                            params["wfc_all"], params["b_fc"])             # (N, num_classes)


if __name__ == "__main__":
    key = jax.random.PRNGKey(0)
    N, C, H, W = 2, 3, 16, 16
    FEAT = 512
    NUM_CLASSES = 1
    CK = C * 9
    B = N * C
    LANES = max(128, ((B * W + 127) // 128) * 128)

    k_x, k_ws, k_wt, k_wf = jax.random.split(key, 4)
    x = jax.random.normal(k_x, (N, C, H, W), dtype=jnp.float32)

    fr_h, fi_h = make_shifted_dft_matrices(H)
    fr_w, fi_w = make_shifted_dft_matrices(W)

    w_src = jax.random.normal(k_ws, (CK, FEAT), jnp.float32) * (2.0 / CK) ** 0.5
    w_tgt = jax.random.normal(k_wt, (CK, FEAT), jnp.float32) * (2.0 / CK) ** 0.5
    w_fc = jax.random.normal(k_wf, (2 * FEAT, NUM_CLASSES), jnp.float32) * (1.0 / (2 * FEAT)) ** 0.5

    params = {
        "f_stack": jnp.concatenate([fr_h, fi_h], axis=0),                  # (2H, H)
        "g_bd_r": block_diag_pad(fr_w.T, B, LANES),                        # (128, 128)
        "g_bd_i": block_diag_pad(fi_w.T, B, LANES),                        # (128, 128)
        "w_all": jnp.stack([w_src, w_tgt], axis=0),                        # (2, CK, F)
        "b_all": jnp.zeros((2, 1, FEAT), jnp.float32),
        "wfc_all": jnp.stack([w_fc[:FEAT], w_fc[FEAT:]], axis=0),          # (2, F, NC)
        "b_fc": jnp.zeros((1, NUM_CLASSES), jnp.float32),
    }

    out = jax.jit(concat_network_forward)(x, params)
    jax.block_until_ready(out)
    assert out.shape == (N, NUM_CLASSES)

    # Loose numerical sanity check against a pure-JAX reference of the same forward.
    def reference_forward(x, params):
        f = jnp.fft.fftshift(jnp.fft.fft2(x.astype(jnp.complex64), norm="ortho"))
        y = jnp.log(jnp.abs(f) + EPS)

        def branch(inp, w, b):
            p = im2col_3x3(inp)
            h = jnp.maximum(jnp.einsum("npk,kf->npf", p, w) + b, 0.0)
            return h.mean(axis=1)

        fx = branch(x, params["w_all"][0], params["b_all"][0])
        fy = branch(y, params["w_all"][1], params["b_all"][1])
        z = jnp.concatenate([fx, fy], axis=1)
        wfc = jnp.concatenate([params["wfc_all"][0], params["wfc_all"][1]], axis=0)
        return z @ wfc + params["b_fc"]

    ref = reference_forward(x, params)
    assert bool(jnp.allclose(out, ref, rtol=5e-2, atol=5e-2)), "kernel output mismatch vs reference"

    print("KERNEL_OK")
</pallas_src>

<mosaic_0001>
module attributes {stable_mosaic.version = 11 : i64} {
  func.func @_dft_kernel(%arg0: memref<16x128xf32, #tpu.memory_space<vmem>>, %arg1: memref<32x16xf32, #tpu.memory_space<vmem>>, %arg2: memref<128x128xf32, #tpu.memory_space<vmem>>, %arg3: memref<128x128xf32, #tpu.memory_space<vmem>>, %arg4: memref<16x128xf32, #tpu.memory_space<vmem>>) attributes {dimension_semantics = [], scalar_prefetch = 0 : i64, scratch_operands = 0 : i64, tpu.core_type = #tpu.core_type<tc>} {
    %c0 = arith.constant 0 : index
    %c0_0 = arith.constant 0 : index
    %0 = vector.load %arg0[%c0, %c0_0] : memref<16x128xf32, #tpu.memory_space<vmem>>, vector<16x128xf32>
    %c0_1 = arith.constant 0 : index
    %c0_2 = arith.constant 0 : index
    %1 = vector.load %arg1[%c0_1, %c0_2] : memref<32x16xf32, #tpu.memory_space<vmem>>, vector<32x16xf32>
    %cst = arith.constant dense<0.000000e+00> : vector<32x128xf32>
    %2 = tpu.matmul %1, %0, %cst {dimension_numbers = #tpu.dot_dimension_numbers<[1], [0], [0], [1], [0, 0, 1, 1], [], []>} : vector<32x16xf32>, vector<16x128xf32>, vector<32x128xf32> -> vector<32x128xf32>
    %c0_3 = arith.constant 0 : index
    %c0_4 = arith.constant 0 : index
    %3 = vector.load %arg2[%c0_3, %c0_4] : memref<128x128xf32, #tpu.memory_space<vmem>>, vector<128x128xf32>
    %cst_5 = arith.constant dense<0.000000e+00> : vector<32x128xf32>
    %4 = tpu.matmul %2, %3, %cst_5 {dimension_numbers = #tpu.dot_dimension_numbers<[1], [0], [0], [1], [0, 0, 1, 1], [], []>} : vector<32x128xf32>, vector<128x128xf32>, vector<32x128xf32> -> vector<32x128xf32>
    %c0_6 = arith.constant 0 : index
    %c0_7 = arith.constant 0 : index
    %5 = vector.load %arg3[%c0_6, %c0_7] : memref<128x128xf32, #tpu.memory_space<vmem>>, vector<128x128xf32>
    %cst_8 = arith.constant dense<0.000000e+00> : vector<32x128xf32>
    %6 = tpu.matmul %2, %5, %cst_8 {dimension_numbers = #tpu.dot_dimension_numbers<[1], [0], [0], [1], [0, 0, 1, 1], [], []>} : vector<32x128xf32>, vector<128x128xf32>, vector<32x128xf32> -> vector<32x128xf32>
    %7 = vector.extract_strided_slice %4 {offsets = [0, 0], sizes = [16, 128], strides = [1, 1]} : vector<32x128xf32> to vector<16x128xf32>
    %8 = vector.extract_strided_slice %6 {offsets = [16, 0], sizes = [16, 128], strides = [1, 1]} : vector<32x128xf32> to vector<16x128xf32>
    %9 = arith.subf %7, %8 : vector<16x128xf32>
    %10 = vector.extract_strided_slice %6 {offsets = [0, 0], sizes = [16, 128], strides = [1, 1]} : vector<32x128xf32> to vector<16x128xf32>
    %11 = vector.extract_strided_slice %4 {offsets = [16, 0], sizes = [16, 128], strides = [1, 1]} : vector<32x128xf32> to vector<16x128xf32>
    %12 = arith.addf %10, %11 : vector<16x128xf32>
    %13 = arith.mulf %9, %9 : vector<16x128xf32>
    %14 = arith.mulf %12, %12 : vector<16x128xf32>
    %15 = arith.addf %13, %14 : vector<16x128xf32>
    %16 = math.sqrt %15 : vector<16x128xf32>
    %cst_9 = arith.constant 9.99999996E-13 : f32
    %17 = vector.broadcast %cst_9 : f32 to vector<16x128xf32>
    %18 = arith.addf %16, %17 : vector<16x128xf32>
    %19 = math.log %18 : vector<16x128xf32>
    %c0_10 = arith.constant 0 : index
    %c0_11 = arith.constant 0 : index
    %20 = vector.load %arg4[%c0_10, %c0_11] : memref<16x128xf32, #tpu.memory_space<vmem>>, vector<16x128xf32>
    tpu.vector_store %arg4[%c0_10, %c0_11], %19 {strides = array<i32>} : memref<16x128xf32, #tpu.memory_space<vmem>>, vector<16x128xf32>,
    return
  }
}

module attributes {stable_mosaic.version = 11 : i64} {
  func.func @_branch_fc_kernel(%arg0: i32, %arg1: i32, %arg2: memref<1x1x256x27xf32, #tpu.memory_space<vmem>>, %arg3: memref<1x27x512xf32, #tpu.memory_space<vmem>>, %arg4: memref<1x1x512xf32, #tpu.memory_space<vmem>>, %arg5: memref<1x512x1xf32, #tpu.memory_space<vmem>>, %arg6: memref<1x1xf32, #tpu.memory_space<vmem>>, %arg7: memref<1x1x1xf32, #tpu.memory_space<vmem>>) attributes {dimension_semantics = [#tpu.dimension_semantics<parallel>, #tpu.dimension_semantics<arbitrary>], iteration_bounds = array<i64: 2, 2>, scalar_prefetch = 0 : i64, scratch_operands = 0 : i64, tpu.core_type = #tpu.core_type<tc>, window_params = [{transform_indices = @transform_0, window_bounds = array<i64: 1, 1, 256, 27>}, {transform_indices = @transform_1, window_bounds = array<i64: 1, 27, 512>}, {transform_indices = @transform_2, window_bounds = array<i64: 1, 1, 512>}, {transform_indices = @transform_3, window_bounds = array<i64: 1, 512, 1>}, {pipeline_mode = #tpu.pipeline_mode<synchronous>, transform_indices = @transform_4, window_bounds = array<i64: 1, 1>}, {transform_indices = @transform_5, window_bounds = array<i64: 1, 1, 1>}]} {
    %c0 = arith.constant 0 : index
    %c0_0 = arith.constant 0 : index
    %c0_1 = arith.constant 0 : index
    %c0_2 = arith.constant 0 : index
    %0 = vector.load %arg2[%c0, %c0_0, %c0_1, %c0_2] : memref<1x1x256x27xf32, #tpu.memory_space<vmem>>, vector<1x1x256x27xf32>
    %1 = vector.shape_cast %0 : vector<1x1x256x27xf32> to vector<256x27xf32>
    %c0_3 = arith.constant 0 : index
    %c0_4 = arith.constant 0 : index
    %c0_5 = arith.constant 0 : index
    %2 = vector.load %arg3[%c0_3, %c0_4, %c0_5] : memref<1x27x512xf32, #tpu.memory_space<vmem>>, vector<1x27x512xf32>
    %3 = vector.shape_cast %2 : vector<1x27x512xf32> to vector<27x512xf32>
    %cst = arith.constant dense<0.000000e+00> : vector<256x512xf32>
    %4 = tpu.matmul %1, %3, %cst {dimension_numbers = #tpu.dot_dimension_numbers<[1], [0], [0], [1], [0, 0, 1, 1], [], []>} : vector<256x27xf32>, vector<27x512xf32>, vector<256x512xf32> -> vector<256x512xf32>
    %c0_6 = arith.constant 0 : index
    %c0_7 = arith.constant 0 : index
    %c0_8 = arith.constant 0 : index
    %5 = vector.load %arg4[%c0_6, %c0_7, %c0_8] : memref<1x1x512xf32, #tpu.memory_space<vmem>>, vector<1x1x512xf32>
    %6 = vector.shape_cast %5 : vector<1x1x512xf32> to vector<1x512xf32>
    %7 = vector.broadcast %6 : vector<1x512xf32> to vector<256x512xf32>
    %8 = arith.addf %4, %7 : vector<256x512xf32>
    %cst_9 = arith.constant 0.000000e+00 : f32
    %9 = vector.broadcast %cst_9 : f32 to vector<256x512xf32>
    %10 = arith.maximumf %8, %9 : vector<256x512xf32>
    %cst_10 = arith.constant dense<0.000000e+00> : vector<512xf32>
    %11 = vector.multi_reduction <add>, %10, %cst_10 [0] : vector<256x512xf32> to vector<512xf32>
    %12 = vector.shape_cast %11 : vector<512xf32> to vector<1x512xf32>
    %cst_11 = arith.constant 2.560000e+02 : f32
    %13 = vector.broadcast %cst_11 : f32 to vector<1x512xf32>
    %14 = arith.divf %12, %13 : vector<1x512xf32>
    %c0_12 = arith.constant 0 : index
    %c0_13 = arith.constant 0 : index
    %c0_14 = arith.constant 0 : index
    %15 = vector.load %arg5[%c0_12, %c0_13, %c0_14] : memref<1x512x1xf32, #tpu.memory_space<vmem>>, vector<1x512x1xf32>
    %16 = vector.shape_cast %15 : vector<1x512x1xf32> to vector<512x1xf32>
    %cst_15 = arith.constant dense<0.000000e+00> : vector<1x1xf32>
    %17 = tpu.matmul %14, %16, %cst_15 {dimension_numbers = #tpu.dot_dimension_numbers<[1], [0], [0], [1], [0, 0, 1, 1], [], []>} : vector<1x512xf32>, vector<512x1xf32>, vector<1x1xf32> -> vector<1x1xf32>
    %c0_i32 = arith.constant 0 : i32
    %18 = arith.cmpi eq, %arg1, %c0_i32 : i32
    %19 = arith.extui %18 : i1 to i32
    %c0_i32_16 = arith.constant 0 : i32
    %20 = arith.cmpi ne, %19, %c0_i32_16 : i32
    scf.if %20 {
      %c0_23 = arith.constant 0 : index
      %c0_24 = arith.constant 0 : index
      %27 = vector.load %arg6[%c0_23, %c0_24] : memref<1x1xf32, #tpu.memory_space<vmem>>, vector<1x1xf32>
      %c0_25 = arith.constant 0 : index
      %c0_26 = arith.constant 0 : index
      %c0_27 = arith.constant 0 : index
      %28 = vector.load %arg7[%c0_25, %c0_26, %c0_27] : memref<1x1x1xf32, #tpu.memory_space<vmem>>, vector<1x1x1xf32>
      %29 = vector.shape_cast %28 : vector<1x1x1xf32> to vector<1x1xf32>
      %30 = vector.shape_cast %27 : vector<1x1xf32> to vector<1x1x1xf32>
      tpu.vector_store %arg7[%c0_25, %c0_26, %c0_27], %30 {strides = array<i32>} : memref<1x1x1xf32, #tpu.memory_space<vmem>>, vector<1x1x1xf32>,
    } else {
    }
    %c0_17 = arith.constant 0 : index
    %c0_18 = arith.constant 0 : index
    %c0_19 = arith.constant 0 : index
    %21 = vector.load %arg7[%c0_17, %c0_18, %c0_19] : memref<1x1x1xf32, #tpu.memory_space<vmem>>, vector<1x1x1xf32>
    %22 = vector.shape_cast %21 : vector<1x1x1xf32> to vector<1x1xf32>
    %23 = arith.addf %22, %17 : vector<1x1xf32>
    %c0_20 = arith.constant 0 : index
    %c0_21 = arith.constant 0 : index
    %c0_22 = arith.constant 0 : index
    %24 = vector.load %arg7[%c0_20, %c0_21, %c0_22] : memref<1x1x1xf32, #tpu.memory_space<vmem>>, vector<1x1x1xf32>
    %25 = vector.shape_cast %24 : vector<1x1x1xf32> to vector<1x1xf32>
    %26 = vector.shape_cast %23 : vector<1x1xf32> to vector<1x1x1xf32>
    tpu.vector_store %arg7[%c0_20, %c0_21, %c0_22], %26 {strides = array<i32>} : memref<1x1x1xf32, #tpu.memory_space<vmem>>, vector<1x1x1xf32>,
    return
  }
  func.func @transform_0(%arg0: i32, %arg1: i32) -> (i32, i32, i32, i32) {
    %c0_i32 = arith.constant 0 : i32
    %c0_i32_0 = arith.constant 0 : i32
    %c0_i32_1 = arith.constant 0 : i32
    return %arg1, %arg0, %c0_i32, %c0_i32_0 : i32, i32, i32, i32
  }
  func.func @transform_1(%arg0: i32, %arg1: i32) -> (i32, i32, i32) {
    %c0_i32 = arith.constant 0 : i32
    %c0_i32_0 = arith.constant 0 : i32
    %c0_i32_1 = arith.constant 0 : i32
    return %arg1, %c0_i32, %c0_i32_0 : i32, i32, i32
  }
  func.func @transform_2(%arg0: i32, %arg1: i32) -> (i32, i32, i32) {
    %c0_i32 = arith.constant 0 : i32
    %c0_i32_0 = arith.constant 0 : i32
    %c0_i32_1 = arith.constant 0 : i32
    return %arg1, %c0_i32, %c0_i32_0 : i32, i32, i32
  }
  func.func @transform_3(%arg0: i32, %arg1: i32) -> (i32, i32, i32) {
    %c0_i32 = arith.constant 0 : i32
    %c0_i32_0 = arith.constant 0 : i32
    %c0_i32_1 = arith.constant 0 : i32
    return %arg1, %c0_i32, %c0_i32_0 : i32, i32, i32
  }
  func.func @transform_4(%arg0: i32, %arg1: i32) -> (i32, i32) {
    %c0_i32 = arith.constant 0 : i32
    %c0_i32_0 = arith.constant 0 : i32
    %c0_i32_1 = arith.constant 0 : i32
    return %c0_i32, %c0_i32_0 : i32, i32
  }
  func.func @transform_5(%arg0: i32, %arg1: i32) -> (i32, i32, i32) {
    %c0_i32 = arith.constant 0 : i32
    %c0_i32_0 = arith.constant 0 : i32
    %c0_i32_1 = arith.constant 0 : i32
    return %arg0, %c0_i32, %c0_i32_0 : i32, i32, i32
  }
}

</mosaic_0001>

<llo_original>
// kernel: concat_network_forward.2
$region0: #{concat_network_forward.2}
  #allocation0 [shape = 'u32[]', space=smem, size = 0x4, offset = 0x4, fixed_abs, tag = 'smem constant byte address 0x4 - core index']
  #allocation1 [shape = 'u32[72,128]{1,0:T(1,128)}', space=vmem, size = 0x9000, scoped, tag = 'internal scratch']
  %s0 = inlined_call_operand.vmem [shape: f32[16,128], index: 0, kind: input, shape index: {}]
  %s1 = inlined_call_operand.vmem [shape: f32[32,16], index: 1, kind: input, shape index: {}]
  %s2 = inlined_call_operand.vmem [shape: f32[128,128], index: 2, kind: input, shape index: {}]
  %s3 = inlined_call_operand.vmem [shape: f32[128,128], index: 3, kind: input, shape index: {}]
  %s4 = inlined_call_operand.vmem [shape: f32[16,128], index: 4, kind: output, shape index: {}]
  %s5 = sld [smem:[#allocation0]]
  $region26: #{concat_network_forward.2} parent=0
    _
  %s7 = ssub.s32 1, %s5
  %s8 = scalar_select 0, %s7, %s5
  // Predicated region
  $region2: #{concat_network_forward.2} parent=0 // pred_check
    _
  $region3: #{concat_network_forward.2} parent=0 // pred_check_branch
    %10 = sbr.rel (0) target = $region5
  $region4: #{concat_network_forward.2} parent=0 // pred_region
    _
  $region5: #{concat_network_forward.2} parent=0 // pred_fallthru
    _
  // Predicated region
  $region6: #{concat_network_forward.2} parent=0 // pred_check
    _
  $region7: #{concat_network_forward.2} parent=0 // pred_check_branch
    %12 = sbr.rel (0) target = $region9
  $region8: #{concat_network_forward.2} parent=0 // pred_region
    _
  $region9: #{concat_network_forward.2} parent=0 // pred_fallthru
    _
  // Predicated region
  $region10: #{concat_network_forward.2} parent=0 // pred_check
    _
  $region11: #{concat_network_forward.2} parent=0 // pred_check_branch
    %14 = sbr.rel (0) target = $region13
  $region12: #{concat_network_forward.2} parent=0 // pred_region
    _
  $region13: #{concat_network_forward.2} parent=0 // pred_fallthru
    _
  // Predicated region
  $region14: #{concat_network_forward.2} parent=0 // pred_check
    _
  $region15: #{concat_network_forward.2} parent=0 // pred_check_branch
    %16 = sbr.rel (0) target = $region17
  $region16: #{concat_network_forward.2} parent=0 // pred_region
    _
  $region17: #{concat_network_forward.2} parent=0 // pred_fallthru
    _
  %v17 = vld [vmem:[%s0] sm:$0xff]
  %v18 = vld [vmem:[%s0 + $0x8] sm:$0xff]
  %v19 = vld [vmem:[%s1] sm:$0xff]
  %v20 = vld [vmem:[%s1 + $0x8] sm:$0xff]
  %v21 = vld [vmem:[%s1 + $0x10] sm:$0xff]
  %v22 = vld [vmem:[%s1 + $0x18] sm:$0xff]
  %vm23 = vcmask 130048
  %v25 = vsel %vm23, %v19, 0
  %v28 = vsel %vm23, %v20, 0
  %v31 = vsel %vm23, %v21, 0
  %v34 = vsel %vm23, %v22, 0
  %36 = vmatpush.msra.mxu0 0.0
  %37 = vmatpush.msra.mxu0 0.0
  %38 = vmatpush.msra.mxu0 0.0
  %39 = vmatpush.msra.mxu0 0.0
  %40 = vmatpush.msra.mxu0 0.0
  %41 = vmatpush.msra.mxu0 0.0
  %42 = vmatpush.msra.mxu0 0.0
  %43 = vmatpush.msra.mxu0 0.0
  %44 = vmatpush.msra.mxu0 0.0
  %45 = vmatpush.msra.mxu0 0.0
  %46 = vmatpush.msra.mxu0 0.0
  %47 = vmatpush.msra.mxu0 0.0
  %48 = vmatpush.msra.mxu0 0.0
  %49 = vmatpush.msra.mxu0 0.0
  %50 = vmatpush.msra.mxu0 %v18
  %51 = vmatpush.msra.mxu0 %v17
  %52 = vmatmul.f32.gmra.mxu0 %v25
  %v53 = vpop.f32.mrf.mxu0
  %v54 = vadd.f32 0.0, %v53
  %55 = vmatmul.f32.gmra.mxu0 %v28
  %v56 = vpop.f32.mrf.mxu0
  %v57 = vadd.f32 0.0, %v56
  %58 = vmatmul.f32.gmra.mxu0 %v31
  %v59 = vpop.f32.mrf.mxu0
  %v60 = vadd.f32 0.0, %v59
  %61 = vmatmul.f32.gmra.mxu0 %v34
  %v62 = vpop.f32.mrf.mxu0
  %v63 = vadd.f32 0.0, %v62
  %64 = vdwg.mxu0
  %v65 = vld [vmem:[%s2] sm:$0xff]
  %v66 = vld [vmem:[%s2 + $0x8] sm:$0xff]
  %v67 = vld [vmem:[%s2 + $0x10] sm:$0xff]
  %v68 = vld [vmem:[%s2 + $0x18] sm:$0xff]
  %v69 = vld [vmem:[%s2 + $0x20] sm:$0xff]
  %v70 = vld [vmem:[%s2 + $0x28] sm:$0xff]
  %v71 = vld [vmem:[%s2 + $0x30] sm:$0xff]
  %v72 = vld [vmem:[%s2 + $0x38] sm:$0xff]
  %v73 = vld [vmem:[%s2 + $0x40] sm:$0xff]
  %v74 = vld [vmem:[%s2 + $0x48] sm:$0xff]
  %v75 = vld [vmem:[%s2 + $0x50] sm:$0xff]
  %v76 = vld [vmem:[%s2 + $0x58] sm:$0xff]
  %v77 = vld [vmem:[%s2 + $0x60] sm:$0xff]
  %v78 = vld [vmem:[%s2 + $0x68] sm:$0xff]
  %v79 = vld [vmem:[%s2 + $0x70] sm:$0xff]
  %v80 = vld [vmem:[%s2 + $0x78] sm:$0xff]
  %81 = vmatpush.msra.mxu0 %v80
  %82 = vmatpush.msra.mxu0 %v79
  %83 = vmatpush.msra.mxu0 %v78
  %84 = vmatpush.msra.mxu0 %v77
  %85 = vmatpush.msra.mxu0 %v76
  %86 = vmatpush.msra.mxu0 %v75
  %87 = vmatpush.msra.mxu0 %v74
  %88 = vmatpush.msra.mxu0 %v73
  %89 = vmatpush.msra.mxu0 %v72
  %90 = vmatpush.msra.mxu0 %v71
  %91 = vmatpush.msra.mxu0 %v70
  %92 = vmatpush.msra.mxu0 %v69
  %93 = vmatpush.msra.mxu0 %v68
  %94 = vmatpush.msra.mxu0 %v67
  %95 = vmatpush.msra.mxu0 %v66
  %96 = vmatpush.msra.mxu0 %v65
  %97 = vmatmul.f32.gmra.mxu0 %v54
  %v98 = vpop.f32.mrf.mxu0
  %v99 = vadd.f32 0.0, %v98
  %100 = vmatmul.f32.gmra.mxu0 %v57
  %v101 = vpop.f32.mrf.mxu0
  %v102 = vadd.f32 0.0, %v101
  %103 = vmatmul.f32.gmra.mxu0 %v60
  %v104 = vpop.f32.mrf.mxu0
  %v105 = vadd.f32 0.0, %v104
  %106 = vmatmul.f32.gmra.mxu0 %v63
  %v107 = vpop.f32.mrf.mxu0
  %v108 = vadd.f32 0.0, %v107
  %109 = vdwg.mxu0
  %v110 = vld [vmem:[%s3] sm:$0xff]
  %v111 = vld [vmem:[%s3 + $0x8] sm:$0xff]
  %v112 = vld [vmem:[%s3 + $0x10] sm:$0xff]
  %v113 = vld [vmem:[%s3 + $0x18] sm:$0xff]
  %v114 = vld [vmem:[%s3 + $0x20] sm:$0xff]
  %v115 = vld [vmem:[%s3 + $0x28] sm:$0xff]
  %v116 = vld [vmem:[%s3 + $0x30] sm:$0xff]
  %v117 = vld [vmem:[%s3 + $0x38] sm:$0xff]
  %v118 = vld [vmem:[%s3 + $0x40] sm:$0xff]
  %v119 = vld [vmem:[%s3 + $0x48] sm:$0xff]
  %v120 = vld [vmem:[%s3 + $0x50] sm:$0xff]
  %v121 = vld [vmem:[%s3 + $0x58] sm:$0xff]
  %v122 = vld [vmem:[%s3 + $0x60] sm:$0xff]
  %v123 = vld [vmem:[%s3 + $0x68] sm:$0xff]
  %v124 = vld [vmem:[%s3 + $0x70] sm:$0xff]
  %v125 = vld [vmem:[%s3 + $0x78] sm:$0xff]
  %126 = vmatpush.msra.mxu0 %v125
  %127 = vmatpush.msra.mxu0 %v124
  %128 = vmatpush.msra.mxu0 %v123
  %129 = vmatpush.msra.mxu0 %v122
  %130 = vmatpush.msra.mxu0 %v121
  %131 = vmatpush.msra.mxu0 %v120
  %132 = vmatpush.msra.mxu0 %v119
  %133 = vmatpush.msra.mxu0 %v118
  %134 = vmatpush.msra.mxu0 %v117
  %135 = vmatpush.msra.mxu0 %v116
  %136 = vmatpush.msra.mxu0 %v115
  %137 = vmatpush.msra.mxu0 %v114
  %138 = vmatpush.msra.mxu0 %v113
  %139 = vmatpush.msra.mxu0 %v112
  %140 = vmatpush.msra.mxu0 %v111
  %141 = vmatpush.msra.mxu0 %v110
  %142 = vmatmul.f32.gmra.mxu0 %v54
  %v143 = vpop.f32.mrf.mxu0
  %v144 = vadd.f32 0.0, %v143
  %145 = vmatmul.f32.gmra.mxu0 %v57
  %v146 = vpop.f32.mrf.mxu0
  %v147 = vadd.f32 0.0, %v146
  %148 = vmatmul.f32.gmra.mxu0 %v60
  %v149 = vpop.f32.mrf.mxu0
  %v150 = vadd.f32 0.0, %v149
  %151 = vmatmul.f32.gmra.mxu0 %v63
  %v152 = vpop.f32.mrf.mxu0
  %v153 = vadd.f32 0.0, %v152
  %154 = vdwg.mxu0
  %v155 = vsub.f32 %v99, %v150
  %v156 = vsub.f32 %v102, %v153
  %v157 = vadd.f32 %v144, %v105
  %v158 = vadd.f32 %v147, %v108
  %v159 = vmul.f32 %v155, %v155
  %v160 = vmul.f32 %v156, %v156
  %v161 = vmul.f32 %v157, %v157
  %v162 = vmul.f32 %v158, %v158
  %v163 = vadd.f32 %v159, %v161
  %v164 = vadd.f32 %v160, %v162
  %v165 = vrsqrt.pop %v163
  %v166 = vmul.f32 %v165, %v163
  %v167 = vmul.f32 %v166, %v165
  %v168 = vmul.f32 0.5, %v167
  %v169 = vsub.f32 1.5, %v168
  %v170 = vmul.f32 %v165, %v169
  %v171 = vmul.f32 %v163, %v170
  %vm172 = vcmp.eq.f32.partialorder %v163, inf
  %v173 = vsel %vm172, %v163, %v171
  %vm174 = vcmp.eq.f32.partialorder %v163, 0.0
  %v175 = vand.u32 %v163, 2147483648
  %v176 = vsel %vm174, %v175, %v173
  %v177 = vrsqrt.pop %v164
  %v178 = vmul.f32 %v177, %v164
  %v179 = vmul.f32 %v178, %v177
  %v180 = vmul.f32 0.5, %v179
  %v181 = vsub.f32 1.5, %v180
  %v182 = vmul.f32 %v177, %v181
  %v183 = vmul.f32 %v164, %v182
  %vm184 = vcmp.eq.f32.partialorder %v164, inf
  %v185 = vsel %vm184, %v164, %v183
  %vm186 = vcmp.eq.f32.partialorder %v164, 0.0
  %v187 = vand.u32 %v164, 2147483648
  %v188 = vsel %vm186, %v187, %v185
  %v189 = vadd.f32 %v176, 1e-12
  %v190 = vadd.f32 %v188, 1e-12
  %v191 = vlog2.pop %v189
  %v192 = vmul.f32 %v191, 0.6931472
  %v193 = vlog2.pop %v190
  %v194 = vmul.f32 %v193, 0.6931472
  %195 = vst [vmem:[%s4] sm:$0xff] %v192
  %196 = vst [vmem:[%s4 + $0x8] sm:$0xff] %v194
  // Predicated region
  $region18: #{concat_network_forward.2} parent=0 // pred_check
    _
  $region19: #{concat_network_forward.2} parent=0 // pred_check_branch
    %198 = sbr.rel (0) target = $region21
  $region20: #{concat_network_forward.2} parent=0 // pred_region
    _
  $region21: #{concat_network_forward.2} parent=0 // pred_fallthru
    _
  // Predicated region
  $region22: #{concat_network_forward.2} parent=0 // pred_check
    _
  $region23: #{concat_network_forward.2} parent=0 // pred_check_branch
    %200 = sbr.rel (0) target = $region25
  $region24: #{concat_network_forward.2} parent=0 // pred_region
    _
  $region25: #{concat_network_forward.2} parent=0 // pred_fallthru
    _

// kernel: concat_network_forward.3
$region0: #{concat_network_forward.3}
  #allocation0 [shape = 'u32[]', space=smem, size = 0x4, offset = 0x4, fixed_abs, tag = 'smem constant byte address 0x4 - core index']
  #allocation1 [shape = 'u32[72,128]{1,0:T(1,128)}', space=vmem, size = 0x9000, scoped, tag = 'internal scratch']
  #allocation2 [shape = 'f32[1,1]{1,0:T(1,128)S(1)}', space=vmem, size = 0x200, scoped, tag = 'scoped memory for concat_network_forward.3']
  %s0 = inlined_call_operand.vmem [shape: f32[2,2,256,27], index: 0, kind: input, shape index: {}]
  %s1 = inlined_call_operand.vmem [shape: f32[2,27,512], index: 1, kind: input, shape index: {}]
  %s2 = inlined_call_operand.vmem [shape: f32[2,1,512], index: 2, kind: input, shape index: {}]
  %s3 = inlined_call_operand.vmem [shape: f32[2,512,1], index: 3, kind: input, shape index: {}]
  %s4 = inlined_call_operand.<no memory space> [shape: f32[1,1], index: 4, kind: input, shape index: {}]
  %s5 = inlined_call_operand.vmem [shape: f32[2,1,1], index: 5, kind: output, shape index: {}]
  %s6 = sld [smem:[#allocation0]]
  $region57: #{concat_network_forward.3} parent=0
    _
  %s8 = ssub.s32 1, %s6
  %s9 = scalar_select 0, %s8, %s6
  %v10 = vstv %s4
  %11 = vst [vmem:[#allocation2] sm:$0x1] %v10
  loop: start=0, step=1, limit=6
  $region2: #{concat_network_forward.3} parent=0 // loop_pre_header
    _
  $region3: #{concat_network_forward.3} parent=0 // loop_header
    %s13 = sphi 0, %s17
    %p14 = scmp.ge.s32.totalorder %s13, 6
    %s20 = sphi 0, %s32
    %s21 = sphi 0, %s28
    %s22 = sphi 0, %s20
    %s23 = sphi 0, %s21
    %s24 = sphi 0, %s22
    %s25 = sphi 0, %s23
    %s37 = sphi 0, %s39
    %s40 = sphi 0, %s37
    %s41 = sphi 0, %s40
    %s57 = sphi 0, %s41
    %s63 = sphi 0, %s65
    %s66 = sphi 0, %s63
    %s67 = sphi 0, %s66
    %s83 = sphi 0, %s67
    %s89 = sphi 0, %s91
    %s92 = sphi 0, %s89
    %s93 = sphi 0, %s92
    %s109 = sphi 0, %s93
    %s115 = sphi 0, %s117
    %s118 = sphi 0, %s115
    %s119 = sphi 0, %s118
    %s135 = sphi 0, %s119
    %s139 = sphi 0, %s139
    %s141 = sphi 0, %s139
    %s142 = sphi 0, %s141
    %s156 = sphi 0, %s142
    %s162 = sphi 0, %s164
    %s165 = sphi 0, %s162
    %s166 = sphi 0, %s165
    %s182 = sphi 0, %s166
  $region4: #{concat_network_forward.3} parent=0 // loop_header_branch
    %16 = sbr.rel (%p14) target = $region8
  $region5: #{concat_network_forward.3} parent=0 // loop_body
    %s18 = ssub.s32 %s13, 1
    %s19 = ssub.s32 %s13, 2
    %s26 = sadd.s32 1, %s21
    %p27 = scmp.ge.s32.totalorder %s26, 2
    %s28 = scalar_select %p27, 0, %s26
    %s29 = sadd.s32 1, %s20
    %s30 = scalar_select %p27, %s29, %s20
    %p31 = scmp.ge.s32.totalorder %s30, 2
    %s32 = scalar_select %p31, 0, %s30
    %s33 = ssub.s32 %s21, %s28
    %s34 = ssub.s32 %s20, %s32
    %s35 = sor.u32 %s33, %s34
    %p36 = scmp.eq.s32.totalorder %s35, 0
    %s38 = sadd.s32 %s37, 1
    %s39 = scalar_select %p36, %s37, %s38
    %p42 = pneg %p36
    %p43 = scmp.eq.s32.totalorder %s13, 3
    %p44 = por %p42, %p43
    %p45 = scmp.ne.s32.totalorder %s37, %s40
    %p46 = scmp.eq.s32.totalorder %s13, 0
    %p47 = por %p45, %p46
    %p48 = scmp.ne.s32.totalorder %s37, %s40
    %p49 = scmp.eq.s32.totalorder %s18, 3
    %p50 = por %p48, %p49
    %p51 = scmp.ne.s32.totalorder %s40, %s41
    %p52 = scmp.eq.s32.totalorder %s18, 0
    %p53 = por %p51, %p52
    %p54 = scmp.ne.s32.totalorder %s40, %s41
    %p55 = scmp.eq.s32.totalorder %s19, 3
    %p56 = por %p54, %p55
    %p58 = scmp.ne.s32.totalorder %s41, %s57
    %p59 = scmp.eq.s32.totalorder %s19, 0
    %p60 = por %p58, %p59
    %s61 = ssub.s32 %s21, %s28
    %p62 = scmp.eq.s32.totalorder %s61, 0
    %s64 = sadd.s32 %s63, 1
    %s65 = scalar_select %p62, %s63, %s64
    %p68 = pneg %p62
    %p69 = scmp.eq.s32.totalorder %s13, 3
    %p70 = por %p68, %p69
    %p71 = scmp.ne.s32.totalorder %s63, %s66
    %p72 = scmp.eq.s32.totalorder %s13, 0
    %p73 = por %p71, %p72
    %p74 = scmp.ne.s32.totalorder %s63, %s66
    %p75 = scmp.eq.s32.totalorder %s18, 3
    %p76 = por %p74, %p75
    %p77 = scmp.ne.s32.totalorder %s66, %s67
    %p78 = scmp.eq.s32.totalorder %s18, 0
    %p79 = por %p77, %p78
    %p80 = scmp.ne.s32.totalorder %s66, %s67
    %p81 = scmp.eq.s32.totalorder %s19, 3
    %p82 = por %p80, %p81
    %p84 = scmp.ne.s32.totalorder %s67, %s83
    %p85 = scmp.eq.s32.totalorder %s19, 0
    %p86 = por %p84, %p85
    %s87 = ssub.s32 %s21, %s28
    %p88 = scmp.eq.s32.totalorder %s87, 0
    %s90 = sadd.s32 %s89, 1
    %s91 = scalar_select %p88, %s89, %s90
    %p94 = pneg %p88
    %p95 = scmp.eq.s32.totalorder %s13, 3
    %p96 = por %p94, %p95
    %p97 = scmp.ne.s32.totalorder %s89, %s92
    %p98 = scmp.eq.s32.totalorder %s13, 0
    %p99 = por %p97, %p98
    %p100 = scmp.ne.s32.totalorder %s89, %s92
    %p101 = scmp.eq.s32.totalorder %s18, 3
    %p102 = por %p100, %p101
    %p103 = scmp.ne.s32.totalorder %s92, %s93
    %p104 = scmp.eq.s32.totalorder %s18, 0
    %p105 = por %p103, %p104
    %p106 = scmp.ne.s32.totalorder %s92, %s93
    %p107 = scmp.eq.s32.totalorder %s19, 3
    %p108 = por %p106, %p107
    %p110 = scmp.ne.s32.totalorder %s93, %s109
    %p111 = scmp.eq.s32.totalorder %s19, 0
    %p112 = por %p110, %p111
    %s113 = ssub.s32 %s21, %s28
    %p114 = scmp.eq.s32.totalorder %s113, 0
    %s116 = sadd.s32 %s115, 1
    %s117 = scalar_select %p114, %s115, %s116
    %p120 = pneg %p114
    %p121 = scmp.eq.s32.totalorder %s13, 3
    %p122 = por %p120, %p121
    %p123 = scmp.ne.s32.totalorder %s115, %s118
    %p124 = scmp.eq.s32.totalorder %s13, 0
    %p125 = por %p123, %p124
    %p126 = scmp.ne.s32.totalorder %s115, %s118
    %p127 = scmp.eq.s32.totalorder %s18, 3
    %p128 = por %p126, %p127
    %p129 = scmp.ne.s32.totalorder %s118, %s119
    %p130 = scmp.eq.s32.totalorder %s18, 0
    %p131 = por %p129, %p130
    %p132 = scmp.ne.s32.totalorder %s118, %s119
    %p133 = scmp.eq.s32.totalorder %s19, 3
    %p134 = por %p132, %p133
    %p136 = scmp.ne.s32.totalorder %s119, %s135
    %p137 = scmp.eq.s32.totalorder %s19, 0
    %p138 = por %p136, %p137
    %s140 = sadd.s32 %s139, 1
    %p143 = scmp.eq.s32.totalorder %s13, 3
    %p144 = scmp.ne.s32.totalorder %s139, %s141
    %p145 = scmp.eq.s32.totalorder %s13, 0
    %p146 = por %p144, %p145
    %p147 = scmp.ne.s32.totalorder %s139, %s141
    %p148 = scmp.eq.s32.totalorder %s18, 3
    %p149 = por %p147, %p148
    %p150 = scmp.ne.s32.totalorder %s141, %s142
    %p151 = scmp.eq.s32.totalorder %s18, 0
    %p152 = por %p150, %p151
    %p153 = scmp.ne.s32.totalorder %s141, %s142
    %p154 = scmp.eq.s32.totalorder %s19, 3
    %p155 = por %p153, %p154
    %p157 = scmp.ne.s32.totalorder %s142, %s156
    %p158 = scmp.eq.s32.totalorder %s19, 0
    %p159 = por %p157, %p158
    %s160 = ssub.s32 %s20, %s32
    %p161 = scmp.eq.s32.totalorder %s160, 0
    %s163 = sadd.s32 %s162, 1
    %s164 = scalar_select %p161, %s162, %s163
    %p167 = pneg %p161
    %p168 = scmp.eq.s32.totalorder %s13, 3
    %p169 = por %p167, %p168
    %p170 = scmp.ne.s32.totalorder %s162, %s165
    %p171 = scmp.eq.s32.totalorder %s13, 0
    %p172 = por %p170, %p171
    %p173 = scmp.ne.s32.totalorder %s162, %s165
    %p174 = scmp.eq.s32.totalorder %s18, 3
    %p175 = por %p173, %p174
    %p176 = scmp.ne.s32.totalorder %s165, %s166
    %p177 = scmp.eq.s32.totalorder %s18, 0
    %p178 = por %p176, %p177
    %p179 = scmp.ne.s32.totalorder %s165, %s166
    %p180 = scmp.eq.s32.totalorder %s19, 3
    %p181 = por %p179, %p180
    %p183 = scmp.ne.s32.totalorder %s166, %s182
    %p184 = scmp.eq.s32.totalorder %s19, 0
    %p185 = por %p183, %p184
    %p186 = scmp.le.s32.totalorder 1, %s13
    %p187 = scmp.lt.s32.totalorder %s13, 5
    %p188 = pnand %p186, %p187
    %p189 = pneg %p188
    // Predicated region
    $region9: #{concat_network_forward.3} parent=5 // pred_check
      _
    $region10: #{concat_network_forward.3} parent=5 // pred_check_branch
      %191 = sbr.rel (%p188) target = $region12
    $region11: #{concat_network_forward.3} parent=5 // pred_region
      %s192 = ssub.s32 %s13, 1
      // Predicated region
      $region13: #{concat_network_forward.3} parent=11 // pred_check
        %p193 = pneg %p152
      $region14: #{concat_network_forward.3} parent=11 // pred_check_branch
        %195 = sbr.rel (%p193) target = $region16
      $region15: #{concat_network_forward.3} parent=11 // pred_region
        _
      $region16: #{concat_network_forward.3} parent=11 // pred_fallthru
        _
    $region12: #{concat_network_forward.3} parent=5 // pred_fallthru
      _
    %p196 = scmp.lt.s32.totalorder %s13, 4
    // Predicated region
    $region17: #{concat_network_forward.3} parent=5 // pred_check
      %p197 = pneg %p196
    $region18: #{concat_network_forward.3} parent=5 // pred_check_branch
      %199 = sbr.rel (%p197) target = $region20
    $region19: #{concat_network_forward.3} parent=5 // pred_region
      // Predicated region
      $region21: #{concat_network_forward.3} parent=19 // pred_check
        %p200 = pneg %p47
      $region22: #{concat_network_forward.3} parent=19 // pred_check_branch
        %202 = sbr.rel (%p200) target = $region24
      $region23: #{concat_network_forward.3} parent=19 // pred_region
        %p203 = scmp.lt.s32.totalorder %s21, 1
        %s204 = scalar_select %p203, %s21, 1
        %p205 = scmp.lt.s32.totalorder %s20, 1
        %s206 = scalar_select %p205, %s20, 1
        %s207 = smul.addr %s206, 32
        %s208 = smul.addr %s204, 64
        %s209 = sadd.s32 %s207, %s208
        %s210 = smul.addr %s209, 8
        %s211 = scalar_lea.vmem %s0, %s210
      $region24: #{concat_network_forward.3} parent=19 // pred_fallthru
        _
      // Predicated region
      $region25: #{concat_network_forward.3} parent=19 // pred_check
        %p212 = pneg %p73
      $region26: #{concat_network_forward.3} parent=19 // pred_check_branch
        %214 = sbr.rel (%p212) target = $region28
      $region27: #{concat_network_forward.3} parent=19 // pred_region
        %p215 = scmp.lt.s32.totalorder %s21, 1
        %s216 = scalar_select %p215, %s21, 1
        %s217 = smul.addr %s216, 16
        %s218 = smul.addr %s217, 8
        %s219 = scalar_lea.vmem %s1, %s218
      $region28: #{concat_network_forward.3} parent=19 // pred_fallthru
        _
      // Predicated region
      $region29: #{concat_network_forward.3} parent=19 // pred_check
        %p220 = pneg %p99
      $region30: #{concat_network_forward.3} parent=19 // pred_check_branch
        %222 = sbr.rel (%p220) target = $region32
      $region31: #{concat_network_forward.3} parent=19 // pred_region
        %p223 = scmp.lt.s32.totalorder %s21, 1
        %s224 = scalar_select %p223, %s21, 1
        %s225 = smul.addr %s224, 4
        %s226 = scalar_lea.vmem %s2, %s225
      $region32: #{concat_network_forward.3} parent=19 // pred_fallthru
        _
      // Predicated region
      $region33: #{concat_network_forward.3} parent=19 // pred_check
        %p227 = pneg %p125
      $region34: #{concat_network_forward.3} parent=19 // pred_check_branch
        %229 = sbr.rel (%p227) target = $region36
      $region35: #{concat_network_forward.3} parent=19 // pred_region
        %p230 = scmp.lt.s32.totalorder %s21, 1
        %s231 = scalar_select %p230, %s21, 1
        %s232 = smul.addr %s231, 64
        %s233 = smul.addr %s232, 8
        %s234 = scalar_lea.vmem %s3, %s233
      $region36: #{concat_network_forward.3} parent=19 // pred_fallthru
        _
    $region20: #{concat_network_forward.3} parent=5 // pred_fallthru
      _
    %p235 = scmp.le.s32.totalorder 1, %s13
    %p236 = scmp.lt.s32.totalorder %s13, 5
    %p237 = pnand %p235, %p236
    %p238 = pneg %p237
    // Predicated region
    $region37: #{concat_network_forward.3} parent=5 // pred_check
      _
    $region38: #{concat_network_forward.3} parent=5 // pred_check_branch
      %240 = sbr.rel (%p237) target = $region40
    $region39: #{concat_network_forward.3} parent=5 // pred_region
      %s241 = ssub.s32 %s13, 1
      %p242 = scmp.lt.s32.totalorder %s23, 1
      %s243 = scalar_select %p242, %s23, 1
      %p244 = scmp.lt.s32.totalorder %s22, 1
      %s245 = scalar_select %p244, %s22, 1
      %s246 = smul.addr %s245, 32
      %s247 = smul.addr %s243, 64
      %s248 = sadd.s32 %s246, %s247
      %s249 = smul.addr %s248, 8
      %s250 = scalar_lea.vmem %s0, %s249
      %p251 = pneg %p53
      %p252 = pneg %p50
      %p253 = scmp.lt.s32.totalorder %s23, 1
      %s254 = scalar_select %p253, %s23, 1
      %s255 = smul.addr %s254, 16
      %s256 = smul.addr %s255, 8
      %s257 = scalar_lea.vmem %s1, %s256
      %p258 = pneg %p79
      %p259 = pneg %p76
      %p260 = scmp.lt.s32.totalorder %s23, 1
      %s261 = scalar_select %p260, %s23, 1
      %s262 = smul.addr %s261, 4
      %s263 = scalar_lea.vmem %s2, %s262
      %p264 = pneg %p105
      %p265 = pneg %p102
      %p266 = scmp.lt.s32.totalorder %s23, 1
      %s267 = scalar_select %p266, %s23, 1
      %s268 = smul.addr %s267, 64
      %s269 = smul.addr %s268, 8
      %s270 = scalar_lea.vmem %s3, %s269
      %p271 = pneg %p131
      %p272 = pneg %p128
      %p273 = pneg %p152
      %p274 = pneg %p149
      %p275 = pneg %p178
      %p276 = pneg %p175
      %p277 = scmp.lt.s32.totalorder %s22, 1
      %s278 = scalar_select %p277, %s22, 1
      %s279 = scalar_lea.vmem %s5, %s278
      %p280 = scmp.lt.s32.totalorder %s23, 1
      %s281 = scalar_select %p280, %s23, 1
      %p282 = scmp.lt.s32.totalorder %s22, 1
      %s283 = scalar_select %p282, %s22, 1
      %s284 = smul.addr %s283, 32
      %s285 = smul.addr %s281, 64
      %s286 = sadd.s32 %s284, %s285
      %s287 = smul.addr %s286, 8
      %s288 = scalar_lea.vmem %s0, %s287
      %p289 = scmp.lt.s32.totalorder %s23, 1
      %s290 = scalar_select %p289, %s23, 1
      %s291 = smul.addr %s290, 16
      %s292 = smul.addr %s291, 8
      %s293 = scalar_lea.vmem %s1, %s292
      %p294 = scmp.lt.s32.totalorder %s23, 1
      %s295 = scalar_select %p294, %s23, 1
      %s296 = smul.addr %s295, 4
      %s297 = scalar_lea.vmem %s2, %s296
      %p298 = scmp.lt.s32.totalorder %s23, 1
      %s299 = scalar_select %p298, %s23, 1
      %s300 = smul.addr %s299, 64
      %s301 = smul.addr %s300, 8
      %s302 = scalar_lea.vmem %s3, %s301
      %p303 = scmp.lt.s32.totalorder %s22, 1
      %s304 = scalar_select %p303, %s22, 1
      %s305 = scalar_lea.vmem %s5, %s304
      %v306 = vld [vmem:[%s288] sm:$0xff]
      %v307 = vld [vmem:[%s288 + $0x8] sm:$0xff]
      %v308 = vld [vmem:[%s288 + $0x10] sm:$0xff]
      %v309 = vld [vmem:[%s288 + $0x18] sm:$0xff]
      %v310 = vld [vmem:[%s288 + $0x20] sm:$0xff]
      %v311 = vld [vmem:[%s288 + $0x28] sm:$0xff]
      %v312 = vld [vmem:[%s288 + $0x30] sm:$0xff]
      %v313 = vld [vmem:[%s288 + $0x38] sm:$0xff]
      %v314 = vld [vmem:[%s288 + $0x40] sm:$0xff]
      %v315 = vld [vmem:[%s288 + $0x48] sm:$0xff]
      %v316 = vld [vmem:[%s288 + $0x50] sm:$0xff]
      %v317 = vld [vmem:[%s288 + $0x58] sm:$0xff]
      %v318 = vld [vmem:[%s288 + $0x60] sm:$0xff]
      %v319 = vld [vmem:[%s288 + $0x68] sm:$0xff]
      %v320 = vld [vmem:[%s288 + $0x70] sm:$0xff]
      %v321 = vld [vmem:[%s288 + $0x78] sm:$0xff]
      %v322 = vld [vmem:[%s288 + $0x80] sm:$0xff]
      %v323 = vld [vmem:[%s288 + $0x88] sm:$0xff]
      %v324 = vld [vmem:[%s288 + $0x90] sm:$0xff]
      %v325 = vld [vmem:[%s288 + $0x98] sm:$0xff]
      %v326 = vld [vmem:[%s288 + $0xa0] sm:$0xff]
      %v327 = vld [vmem:[%s288 + $0xa8] sm:$0xff]
      %v328 = vld [vmem:[%s288 + $0xb0] sm:$0xff]
      %v329 = vld [vmem:[%s288 + $0xb8] sm:$0xff]
      %v330 = vld [vmem:[%s288 + $0xc0] sm:$0xff]
      %v331 = vld [vmem:[%s288 + $0xc8] sm:$0xff]
      %v332 = vld [vmem:[%s288 + $0xd0] sm:$0xff]
      %v333 = vld [vmem:[%s288 + $0xd8] sm:$0xff]
      %v334 = vld [vmem:[%s288 + $0xe0] sm:$0xff]
      %v335 = vld [vmem:[%s288 + $0xe8] sm:$0xff]
      %v336 = vld [vmem:[%s288 + $0xf0] sm:$0xff]
      %v337 = vld [vmem:[%s288 + $0xf8] sm:$0xff]
      %v338 = vld [vmem:[%s293] sm:$0xff]
      %v339 = vld [vmem:[%s293 + $0x8] sm:$0xff]
      %v340 = vld [vmem:[%s293 + $0x10] sm:$0xff]
      %v341 = vld [vmem:[%s293 + $0x18] sm:$0xff]
      %v342 = vld [vmem:[%s293 + $0x20] sm:$0xff]
      %v343 = vld [vmem:[%s293 + $0x28] sm:$0xff]
      %v344 = vld [vmem:[%s293 + $0x30] sm:$0xff]
      %v345 = vld [vmem:[%s293 + $0x38] sm:$0xff]
      %v346 = vld [vmem:[%s293 + $0x40] sm:$0xff]
      %v347 = vld [vmem:[%s293 + $0x48] sm:$0xff]
      %v348 = vld [vmem:[%s293 + $0x50] sm:$0xff]
      %v349 = vld [vmem:[%s293 + $0x58] sm:$0xff]
      %v350 = vld [vmem:[%s293 + $0x60] sm:$0x7]
      %v351 = vld [vmem:[%s293 + $0x68] sm:$0x7]
      %v352 = vld [vmem:[%s293 + $0x70] sm:$0x7]
      %v353 = vld [vmem:[%s293 + $0x78] sm:$0x7]
      %v354 = vld [vmem:[%s297] sm:$0xf]
      %v356 = vperm.slane %v354, 0
      %v357 = vperm.slane %v354, 1
      %v358 = vperm.slane %v354, 2
      %v359 = vperm.slane %v354, 3
      %vm364 = vcmask 220160
      %v366 = vsel %vm364, %v306, 0
      %v369 = vsel %vm364, %v307, 0
      %v372 = vsel %vm364, %v308, 0
      %v375 = vsel %vm364, %v309, 0
      %v378 = vsel %vm364, %v310, 0
      %v381 = vsel %vm364, %v311, 0
      %v384 = vsel %vm364, %v312, 0
      %v387 = vsel %vm364, %v313, 0
      %v390 = vsel %vm364, %v314, 0
      %v393 = vsel %vm364, %v315, 0
      %v396 = vsel %vm364, %v316, 0
      %v399 = vsel %vm364, %v317, 0
      %v402 = vsel %vm364, %v318, 0
      %v405 = vsel %vm364, %v319, 0
      %v408 = vsel %vm364, %v320, 0
      %v411 = vsel %vm364, %v321, 0
      %v414 = vsel %vm364, %v322, 0
      %v417 = vsel %vm364, %v323, 0
      %v420 = vsel %vm364, %v324, 0
      %v423 = vsel %vm364, %v325, 0
      %v426 = vsel %vm364, %v326, 0
      %v429 = vsel %vm364, %v327, 0
      %v432 = vsel %vm364, %v328, 0
      %v435 = vsel %vm364, %v329, 0
      %v438 = vsel %vm364, %v330, 0
      %v441 = vsel %vm364, %v331, 0
      %v444 = vsel %vm364, %v332, 0
      %v447 = vsel %vm364, %v333, 0
      %v450 = vsel %vm364, %v334, 0
      %v453 = vsel %vm364, %v335, 0
      %v456 = vsel %vm364, %v336, 0
      %v459 = vsel %vm364, %v337, 0
      %vm461 = vcmask 1042432
      %v463 = vsel %vm461, %v350, 0
      %v466 = vsel %vm461, %v351, 0
      %v469 = vsel %vm461, %v352, 0
      %v472 = vsel %vm461, %v353, 0
      %474 = vmatpush.msra.mxu0 0.0
      %475 = vmatpush.msra.mxu0 0.0
      %476 = vmatpush.msra.mxu0 0.0
      %477 = vmatpush.msra.mxu0 0.0
      %478 = vmatpush.msra.mxu0 0.0
      %479 = vmatpush.msra.mxu0 0.0
      %480 = vmatpush.msra.mxu0 0.0
      %481 = vmatpush.msra.mxu0 0.0
      %482 = vmatpush.msra.mxu0 0.0
      %483 = vmatpush.msra.mxu0 0.0
      %484 = vmatpush.msra.mxu0 0.0
      %485 = vmatpush.msra.mxu0 0.0
      %486 = vmatpush.msra.mxu0 %v463
      %487 = vmatpush.msra.mxu0 %v346
      %488 = vmatpush.msra.mxu0 %v342
      %489 = vmatpush.msra.mxu0 %v338
      %490 = vmatmul.f32.gmra.mxu0 %v366
      %v491 = vpop.f32.mrf.mxu0
      %v492 = vadd.f32 %v356, %v491
      %493 = vmatmul.f32.gmra.mxu0 %v369
      %v494 = vpop.f32.mrf.mxu0
      %v495 = vadd.f32 %v356, %v494
      %496 = vmatmul.f32.gmra.mxu0 %v372
      %v497 = vpop.f32.mrf.mxu0
      %v498 = vadd.f32 %v356, %v497
      %499 = vmatmul.f32.gmra.mxu0 %v375
      %v500 = vpop.f32.mrf.mxu0
      %v501 = vadd.f32 %v356, %v500
      %502 = vmatmul.f32.gmra.mxu0 %v378
      %v503 = vpop.f32.mrf.mxu0
      %v504 = vadd.f32 %v356, %v503
      %505 = vmatmul.f32.gmra.mxu0 %v381
      %v506 = vpop.f32.mrf.mxu0
      %v507 = vadd.f32 %v356, %v506
      %508 = vmatmul.f32.gmra.mxu0 %v384
      %v509 = vpop.f32.mrf.mxu0
      %v510 = vadd.f32 %v356, %v509
      %511 = vmatmul.f32.gmra.mxu0 %v387
      %v512 = vpop.f32.mrf.mxu0
      %v513 = vadd.f32 %v356, %v512
      %514 = vmatmul.f32.gmra.mxu0 %v390
      %v515 = vpop.f32.mrf.mxu0
      %v516 = vadd.f32 %v356, %v515
      %517 = vmatmul.f32.gmra.mxu0 %v393
      %v518 = vpop.f32.mrf.mxu0
      %v519 = vadd.f32 %v356, %v518
      %520 = vmatmul.f32.gmra.mxu0 %v396
      %v521 = vpop.f32.mrf.mxu0
      %v522 = vadd.f32 %v356, %v521
      %523 = vmatmul.f32.gmra.mxu0 %v399
      %v524 = vpop.f32.mrf.mxu0
      %v525 = vadd.f32 %v356, %v524
      %526 = vmatmul.f32.gmra.mxu0 %v402
      %v527 = vpop.f32.mrf.mxu0
      %v528 = vadd.f32 %v356, %v527
      %529 = vmatmul.f32.gmra.mxu0 %v405
      %v530 = vpop.f32.mrf.mxu0
      %v531 = vadd.f32 %v356, %v530
      %532 = vmatmul.f32.gmra.mxu0 %v408
      %v533 = vpop.f32.mrf.mxu0
      %v534 = vadd.f32 %v356, %v533
      %535 = vmatmul.f32.gmra.mxu0 %v411
      %v536 = vpop.f32.mrf.mxu0
      %v537 = vadd.f32 %v356, %v536
      %538 = vmatmul.f32.gmra.mxu0 %v414
      %v539 = vpop.f32.mrf.mxu0
      %v540 = vadd.f32 %v356, %v539
      %541 = vmatmul.f32.gmra.mxu0 %v417
      %v542 = vpop.f32.mrf.mxu0
      %v543 = vadd.f32 %v356, %v542
      %544 = vmatmul.f32.gmra.mxu0 %v420
      %v545 = vpop.f32.mrf.mxu0
      %v546 = vadd.f32 %v356, %v545
      %547 = vmatmul.f32.gmra.mxu0 %v423
      %v548 = vpop.f32.mrf.mxu0
      %v549 = vadd.f32 %v356, %v548
      %550 = vmatmul.f32.gmra.mxu0 %v426
      %v551 = vpop.f32.mrf.mxu0
      %v552 = vadd.f32 %v356, %v551
      %553 = vmatmul.f32.gmra.mxu0 %v429
      %v554 = vpop.f32.mrf.mxu0
      %v555 = vadd.f32 %v356, %v554
      %556 = vmatmul.f32.gmra.mxu0 %v432
      %v557 = vpop.f32.mrf.mxu0
      %v558 = vadd.f32 %v356, %v557
      %559 = vmatmul.f32.gmra.mxu0 %v435
      %v560 = vpop.f32.mrf.mxu0
      %v561 = vadd.f32 %v356, %v560
      %562 = vmatmul.f32.gmra.mxu0 %v438
      %v563 = vpop.f32.mrf.mxu0
      %v564 = vadd.f32 %v356, %v563
      %565 = vmatmul.f32.gmra.mxu0 %v441
      %v566 = vpop.f32.mrf.mxu0
      %v567 = vadd.f32 %v356, %v566
      %568 = vmatmul.f32.gmra.mxu0 %v444
      %v569 = vpop.f32.mrf.mxu0
      %v570 = vadd.f32 %v356, %v569
      %571 = vmatmul.f32.gmra.mxu0 %v447
      %v572 = vpop.f32.mrf.mxu0
      %v573 = vadd.f32 %v356, %v572
      %574 = vmatmul.f32.gmra.mxu0 %v450
      %v575 = vpop.f32.mrf.mxu0
      %v576 = vadd.f32 %v356, %v575
      %577 = vmatmul.f32.gmra.mxu0 %v453
      %v578 = vpop.f32.mrf.mxu0
      %v579 = vadd.f32 %v356, %v578
      %580 = vmatmul.f32.gmra.mxu0 %v456
      %v581 = vpop.f32.mrf.mxu0
      %v582 = vadd.f32 %v356, %v581
      %583 = vmatmul.f32.gmra.mxu0 %v459
      %v584 = vpop.f32.mrf.mxu0
      %v585 = vadd.f32 %v356, %v584
      %586 = vdwg.mxu0
      %587 = vmatpush.msra.mxu0 0.0
      %588 = vmatpush.msra.mxu0 0.0
      %589 = vmatpush.msra.mxu0 0.0
      %590 = vmatpush.msra.mxu0 0.0
      %591 = vmatpush.msra.mxu0 0.0
      %592 = vmatpush.msra.mxu0 0.0
      %593 = vmatpush.msra.mxu0 0.0
      %594 = vmatpush.msra.mxu0 0.0
      %595 = vmatpush.msra.mxu0 0.0
      %596 = vmatpush.msra.mxu0 0.0
      %597 = vmatpush.msra.mxu0 0.0
      %598 = vmatpush.msra.mxu0 0.0
      %599 = vmatpush.msra.mxu0 %v466
      %600 = vmatpush.msra.mxu0 %v347
      %601 = vmatpush.msra.mxu0 %v343
      %602 = vmatpush.msra.mxu0 %v339
      %603 = vmatmul.f32.gmra.mxu0 %v366
      %v604 = vpop.f32.mrf.mxu0
      %v605 = vadd.f32 %v357, %v604
      %606 = vmatmul.f32.gmra.mxu0 %v369
      %v607 = vpop.f32.mrf.mxu0
      %v608 = vadd.f32 %v357, %v607
      %609 = vmatmul.f32.gmra.mxu0 %v372
      %v610 = vpop.f32.mrf.mxu0
      %v611 = vadd.f32 %v357, %v610
      %612 = vmatmul.f32.gmra.mxu0 %v375
      %v613 = vpop.f32.mrf.mxu0
      %v614 = vadd.f32 %v357, %v613
      %615 = vmatmul.f32.gmra.mxu0 %v378
      %v616 = vpop.f32.mrf.mxu0
      %v617 = vadd.f32 %v357, %v616
      %618 = vmatmul.f32.gmra.mxu0 %v381
      %v619 = vpop.f32.mrf.mxu0
      %v620 = vadd.f32 %v357, %v619
      %621 = vmatmul.f32.gmra.mxu0 %v384
      %v622 = vpop.f32.mrf.mxu0
      %v623 = vadd.f32 %v357, %v622
      %624 = vmatmul.f32.gmra.mxu0 %v387
      %v625 = vpop.f32.mrf.mxu0
      %v626 = vadd.f32 %v357, %v625
      %627 = vmatmul.f32.gmra.mxu0 %v390
      %v628 = vpop.f32.mrf.mxu0
      %v629 = vadd.f32 %v357, %v628
      %630 = vmatmul.f32.gmra.mxu0 %v393
      %v631 = vpop.f32.mrf.mxu0
      %v632 = vadd.f32 %v357, %v631
      %633 = vmatmul.f32.gmra.mxu0 %v396
      %v634 = vpop.f32.mrf.mxu0
      %v635 = vadd.f32 %v357, %v634
      %636 = vmatmul.f32.gmra.mxu0 %v399
      %v637 = vpop.f32.mrf.mxu0
      %v638 = vadd.f32 %v357, %v637
      %639 = vmatmul.f32.gmra.mxu0 %v402
      %v640 = vpop.f32.mrf.mxu0
      %v641 = vadd.f32 %v357, %v640
      %642 = vmatmul.f32.gmra.mxu0 %v405
      %v643 = vpop.f32.mrf.mxu0
      %v644 = vadd.f32 %v357, %v643
      %645 = vmatmul.f32.gmra.mxu0 %v408
      %v646 = vpop.f32.mrf.mxu0
      %v647 = vadd.f32 %v357, %v646
      %648 = vmatmul.f32.gmra.mxu0 %v411
      %v649 = vpop.f32.mrf.mxu0
      %v650 = vadd.f32 %v357, %v649
      %651 = vmatmul.f32.gmra.mxu0 %v414
      %v652 = vpop.f32.mrf.mxu0
      %v653 = vadd.f32 %v357, %v652
      %654 = vmatmul.f32.gmra.mxu0 %v417
      %v655 = vpop.f32.mrf.mxu0
      %v656 = vadd.f32 %v357, %v655
      %657 = vmatmul.f32.gmra.mxu0 %v420
      %v658 = vpop.f32.mrf.mxu0
      %v659 = vadd.f32 %v357, %v658
      %660 = vmatmul.f32.gmra.mxu0 %v423
      %v661 = vpop.f32.mrf.mxu0
      %v662 = vadd.f32 %v357, %v661
      %663 = vmatmul.f32.gmra.mxu0 %v426
      %v664 = vpop.f32.mrf.mxu0
      %v665 = vadd.f32 %v357, %v664
      %666 = vmatmul.f32.gmra.mxu0 %v429
      %v667 = vpop.f32.mrf.mxu0
      %v668 = vadd.f32 %v357, %v667
      %669 = vmatmul.f32.gmra.mxu0 %v432
      %v670 = vpop.f32.mrf.mxu0
      %v671 = vadd.f32 %v357, %v670
      %672 = vmatmul.f32.gmra.mxu0 %v435
      %v673 = vpop.f32.mrf.mxu0
      %v674 = vadd.f32 %v357, %v673
      %675 = vmatmul.f32.gmra.mxu0 %v438
      %v676 = vpop.f32.mrf.mxu0
      %v677 = vadd.f32 %v357, %v676
      %678 = vmatmul.f32.gmra.mxu0 %v441
      %v679 = vpop.f32.mrf.mxu0
      %v680 = vadd.f32 %v357, %v679
      %681 = vmatmul.f32.gmra.mxu0 %v444
      %v682 = vpop.f32.mrf.mxu0
      %v683 = vadd.f32 %v357, %v682
      %684 = vmatmul.f32.gmra.mxu0 %v447
      %v685 = vpop.f32.mrf.mxu0
      %v686 = vadd.f32 %v357, %v685
      %687 = vmatmul.f32.gmra.mxu0 %v450
      %v688 = vpop.f32.mrf.mxu0
      %v689 = vadd.f32 %v357, %v688
      %690 = vmatmul.f32.gmra.mxu0 %v453
      %v691 = vpop.f32.mrf.mxu0
      %v692 = vadd.f32 %v357, %v691
      %693 = vmatmul.f32.gmra.mxu0 %v456
      %v694 = vpop.f32.mrf.mxu0
      %v695 = vadd.f32 %v357, %v694
      %696 = vmatmul.f32.gmra.mxu0 %v459
      %v697 = vpop.f32.mrf.mxu0
      %v698 = vadd.f32 %v357, %v697
      %699 = vdwg.mxu0
      %700 = vmatpush.msra.mxu0 0.0
      %701 = vmatpush.msra.mxu0 0.0
      %702 = vmatpush.msra.mxu0 0.0
      %703 = vmatpush.msra.mxu0 0.0
      %704 = vmatpush.msra.mxu0 0.0
      %705 = vmatpush.msra.mxu0 0.0
      %706 = vmatpush.msra.mxu0 0.0
      %707 = vmatpush.msra.mxu0 0.0
      %708 = vmatpush.msra.mxu0 0.0
      %709 = vmatpush.msra.mxu0 0.0
      %710 = vmatpush.msra.mxu0 0.0
      %711 = vmatpush.msra.mxu0 0.0
      %712 = vmatpush.msra.mxu0 %v469
      %713 = vmatpush.msra.mxu0 %v348
      %714 = vmatpush.msra.mxu0 %v344
      %715 = vmatpush.msra.mxu0 %v340
      %716 = vmatmul.f32.gmra.mxu0 %v366
      %v717 = vpop.f32.mrf.mxu0
      %v718 = vadd.f32 %v358, %v717
      %719 = vmatmul.f32.gmra.mxu0 %v369
      %v720 = vpop.f32.mrf.mxu0
      %v721 = vadd.f32 %v358, %v720
      %722 = vmatmul.f32.gmra.mxu0 %v372
      %v723 = vpop.f32.mrf.mxu0
      %v724 = vadd.f32 %v358, %v723
      %725 = vmatmul.f32.gmra.mxu0 %v375
      %v726 = vpop.f32.mrf.mxu0
      %v727 = vadd.f32 %v358, %v726
      %728 = vmatmul.f32.gmra.mxu0 %v378
      %v729 = vpop.f32.mrf.mxu0
      %v730 = vadd.f32 %v358, %v729
      %731 = vmatmul.f32.gmra.mxu0 %v381
      %v732 = vpop.f32.mrf.mxu0
      %v733 = vadd.f32 %v358, %v732
      %734 = vmatmul.f32.gmra.mxu0 %v384
      %v735 = vpop.f32.mrf.mxu0
      %v736 = vadd.f32 %v358, %v735
      %737 = vmatmul.f32.gmra.mxu0 %v387
      %v738 = vpop.f32.mrf.mxu0
      %v739 = vadd.f32 %v358, %v738
      %740 = vmatmul.f32.gmra.mxu0 %v390
      %v741 = vpop.f32.mrf.mxu0
      %v742 = vadd.f32 %v358, %v741
      %743 = vmatmul.f32.gmra.mxu0 %v393
      %v744 = vpop.f32.mrf.mxu0
      %v745 = vadd.f32 %v358, %v744
      %746 = vmatmul.f32.gmra.mxu0 %v396
      %v747 = vpop.f32.mrf.mxu0
      %v748 = vadd.f32 %v358, %v747
      %749 = vmatmul.f32.gmra.mxu0 %v399
      %v750 = vpop.f32.mrf.mxu0
      %v751 = vadd.f32 %v358, %v750
      %752 = vmatmul.f32.gmra.mxu0 %v402
      %v753 = vpop.f32.mrf.mxu0
      %v754 = vadd.f32 %v358, %v753
      %755 = vmatmul.f32.gmra.mxu0 %v405
      %v756 = vpop.f32.mrf.mxu0
      %v757 = vadd.f32 %v358, %v756
      %758 = vmatmul.f32.gmra.mxu0 %v408
      %v759 = vpop.f32.mrf.mxu0
      %v760 = vadd.f32 %v358, %v759
      %761 = vmatmul.f32.gmra.mxu0 %v411
      %v762 = vpop.f32.mrf.mxu0
      %v763 = vadd.f32 %v358, %v762
      %764 = vmatmul.f32.gmra.mxu0 %v414
      %v765 = vpop.f32.mrf.mxu0
      %v766 = vadd.f32 %v358, %v765
      %767 = vmatmul.f32.gmra.mxu0 %v417
      %v768 = vpop.f32.mrf.mxu0
      %v769 = vadd.f32 %v358, %v768
      %770 = vmatmul.f32.gmra.mxu0 %v420
      %v771 = vpop.f32.mrf.mxu0
      %v772 = vadd.f32 %v358, %v771
      %773 = vmatmul.f32.gmra.mxu0 %v423
      %v774 = vpop.f32.mrf.mxu0
      %v775 = vadd.f32 %v358, %v774
      %776 = vmatmul.f32.gmra.mxu0 %v426
      %v777 = vpop.f32.mrf.mxu0
      %v778 = vadd.f32 %v358, %v777
      %779 = vmatmul.f32.gmra.mxu0 %v429
      %v780 = vpop.f32.mrf.mxu0
      %v781 = vadd.f32 %v358, %v780
      %782 = vmatmul.f32.gmra.mxu0 %v432
      %v783 = vpop.f32.mrf.mxu0
      %v784 = vadd.f32 %v358, %v783
      %785 = vmatmul.f32.gmra.mxu0 %v435
      %v786 = vpop.f32.mrf.mxu0
      %v787 = vadd.f32 %v358, %v786
      %788 = vmatmul.f32.gmra.mxu0 %v438
      %v789 = vpop.f32.mrf.mxu0
      %v790 = vadd.f32 %v358, %v789
      %791 = vmatmul.f32.gmra.mxu0 %v441
      %v792 = vpop.f32.mrf.mxu0
      %v793 = vadd.f32 %v358, %v792
      %794 = vmatmul.f32.gmra.mxu0 %v444
      %v795 = vpop.f32.mrf.mxu0
      %v796 = vadd.f32 %v358, %v795
      %797 = vmatmul.f32.gmra.mxu0 %v447
      %v798 = vpop.f32.mrf.mxu0
      %v799 = vadd.f32 %v358, %v798
      %800 = vmatmul.f32.gmra.mxu0 %v450
      %v801 = vpop.f32.mrf.mxu0
      %v802 = vadd.f32 %v358, %v801
      %803 = vmatmul.f32.gmra.mxu0 %v453
      %v804 = vpop.f32.mrf.mxu0
      %v805 = vadd.f32 %v358, %v804
      %806 = vmatmul.f32.gmra.mxu0 %v456
      %v807 = vpop.f32.mrf.mxu0
      %v808 = vadd.f32 %v358, %v807
      %809 = vmatmul.f32.gmra.mxu0 %v459
      %v810 = vpop.f32.mrf.mxu0
      %v811 = vadd.f32 %v358, %v810
      %812 = vdwg.mxu0
      %813 = vmatpush.msra.mxu0 0.0
      %814 = vmatpush.msra.mxu0 0.0
      %815 = vmatpush.msra.mxu0 0.0
      %816 = vmatpush.msra.mxu0 0.0
      %817 = vmatpush.msra.mxu0 0.0
      %818 = vmatpush.msra.mxu0 0.0
      %819 = vmatpush.msra.mxu0 0.0
      %820 = vmatpush.msra.mxu0 0.0
      %821 = vmatpush.msra.mxu0 0.0
      %822 = vmatpush.msra.mxu0 0.0
      %823 = vmatpush.msra.mxu0 0.0
      %824 = vmatpush.msra.mxu0 0.0
      %825 = vmatpush.msra.mxu0 %v472
      %826 = vmatpush.msra.mxu0 %v349
      %827 = vmatpush.msra.mxu0 %v345
      %828 = vmatpush.msra.mxu0 %v341
      %829 = vmatmul.f32.gmra.mxu0 %v366
      %v830 = vpop.f32.mrf.mxu0
      %v831 = vadd.f32 %v359, %v830
      %832 = vmatmul.f32.gmra.mxu0 %v369
      %v833 = vpop.f32.mrf.mxu0
      %v834 = vadd.f32 %v359, %v833
      %835 = vmatmul.f32.gmra.mxu0 %v372
      %v836 = vpop.f32.mrf.mxu0
      %v837 = vadd.f32 %v359, %v836
      %838 = vmatmul.f32.gmra.mxu0 %v375
      %v839 = vpop.f32.mrf.mxu0
      %v840 = vadd.f32 %v359, %v839
      %841 = vmatmul.f32.gmra.mxu0 %v378
      %v842 = vpop.f32.mrf.mxu0
      %v843 = vadd.f32 %v359, %v842
      %844 = vmatmul.f32.gmra.mxu0 %v381
      %v845 = vpop.f32.mrf.mxu0
      %v846 = vadd.f32 %v359, %v845
      %847 = vmatmul.f32.gmra.mxu0 %v384
      %v848 = vpop.f32.mrf.mxu0
      %v849 = vadd.f32 %v359, %v848
      %850 = vmatmul.f32.gmra.mxu0 %v387
      %v851 = vpop.f32.mrf.mxu0
      %v852 = vadd.f32 %v359, %v851
      %853 = vmatmul.f32.gmra.mxu0 %v390
      %v854 = vpop.f32.mrf.mxu0
      %v855 = vadd.f32 %v359, %v854
      %856 = vmatmul.f32.gmra.mxu0 %v393
      %v857 = vpop.f32.mrf.mxu0
      %v858 = vadd.f32 %v359, %v857
      %859 = vmatmul.f32.gmra.mxu0 %v396
      %v860 = vpop.f32.mrf.mxu0
      %v861 = vadd.f32 %v359, %v860
      %862 = vmatmul.f32.gmra.mxu0 %v399
      %v863 = vpop.f32.mrf.mxu0
      %v864 = vadd.f32 %v359, %v863
      %865 = vmatmul.f32.gmra.mxu0 %v402
      %v866 = vpop.f32.mrf.mxu0
      %v867 = vadd.f32 %v359, %v866
      %868 = vmatmul.f32.gmra.mxu0 %v405
      %v869 = vpop.f32.mrf.mxu0
      %v870 = vadd.f32 %v359, %v869
      %871 = vmatmul.f32.gmra.mxu0 %v408
      %v872 = vpop.f32.mrf.mxu0
      %v873 = vadd.f32 %v359, %v872
      %874 = vmatmul.f32.gmra.mxu0 %v411
      %v875 = vpop.f32.mrf.mxu0
      %v876 = vadd.f32 %v359, %v875
      %877 = vmatmul.f32.gmra.mxu0 %v414
      %v878 = vpop.f32.mrf.mxu0
      %v879 = vadd.f32 %v359, %v878
      %880 = vmatmul.f32.gmra.mxu0 %v417
      %v881 = vpop.f32.mrf.mxu0
      %v882 = vadd.f32 %v359, %v881
      %883 = vmatmul.f32.gmra.mxu0 %v420
      %v884 = vpop.f32.mrf.mxu0
      %v885 = vadd.f32 %v359, %v884
      %886 = vmatmul.f32.gmra.mxu0 %v423
      %v887 = vpop.f32.mrf.mxu0
      %v888 = vadd.f32 %v359, %v887
      %889 = vmatmul.f32.gmra.mxu0 %v426
      %v890 = vpop.f32.mrf.mxu0
      %v891 = vadd.f32 %v359, %v890
      %892 = vmatmul.f32.gmra.mxu0 %v429
      %v893 = vpop.f32.mrf.mxu0
      %v894 = vadd.f32 %v359, %v893
      %895 = vmatmul.f32.gmra.mxu0 %v432
      %v896 = vpop.f32.mrf.mxu0
      %v897 = vadd.f32 %v359, %v896
      %898 = vmatmul.f32.gmra.mxu0 %v435
      %v899 = vpop.f32.mrf.mxu0
      %v900 = vadd.f32 %v359, %v899
      %901 = vmatmul.f32.gmra.mxu0 %v438
      %v902 = vpop.f32.mrf.mxu0
      %v903 = vadd.f32 %v359, %v902
      %904 = vmatmul.f32.gmra.mxu0 %v441
      %v905 = vpop.f32.mrf.mxu0
      %v906 = vadd.f32 %v359, %v905
      %907 = vmatmul.f32.gmra.mxu0 %v444
      %v908 = vpop.f32.mrf.mxu0
      %v909 = vadd.f32 %v359, %v908
      %910 = vmatmul.f32.gmra.mxu0 %v447
      %v911 = vpop.f32.mrf.mxu0
      %v912 = vadd.f32 %v359, %v911
      %913 = vmatmul.f32.gmra.mxu0 %v450
      %v914 = vpop.f32.mrf.mxu0
      %v915 = vadd.f32 %v359, %v914
      %916 = vmatmul.f32.gmra.mxu0 %v453
      %v917 = vpop.f32.mrf.mxu0
      %v918 = vadd.f32 %v359, %v917
      %919 = vmatmul.f32.gmra.mxu0 %v456
      %v920 = vpop.f32.mrf.mxu0
      %v921 = vadd.f32 %v359, %v920
      %922 = vmatmul.f32.gmra.mxu0 %v459
      %v923 = vpop.f32.mrf.mxu0
      %v924 = vadd.f32 %v359, %v923
      %925 = vdwg.mxu0
      %v926 = vmax.f32 %v492, 0.0
      %v927 = vmax.f32 %v605, 0.0
      %v928 = vmax.f32 %v718, 0.0
      %v929 = vmax.f32 %v831, 0.0
      %v930 = vmax.f32 %v495, 0.0
      %v931 = vmax.f32 %v608, 0.0
      %v932 = vmax.f32 %v721, 0.0
      %v933 = vmax.f32 %v834, 0.0
      %v934 = vmax.f32 %v498, 0.0
      %v935 = vmax.f32 %v611, 0.0
      %v936 = vmax.f32 %v724, 0.0
      %v937 = vmax.f32 %v837, 0.0
      %v938 = vmax.f32 %v501, 0.0
      %v939 = vmax.f32 %v614, 0.0
      %v940 = vmax.f32 %v727, 0.0
      %v941 = vmax.f32 %v840, 0.0
      %v942 = vmax.f32 %v504, 0.0
      %v943 = vmax.f32 %v617, 0.0
      %v944 = vmax.f32 %v730, 0.0
      %v945 = vmax.f32 %v843, 0.0
      %v946 = vmax.f32 %v507, 0.0
      %v947 = vmax.f32 %v620, 0.0
      %v948 = vmax.f32 %v733, 0.0
      %v949 = vmax.f32 %v846, 0.0
      %v950 = vmax.f32 %v510, 0.0
      %v951 = vmax.f32 %v623, 0.0
      %v952 = vmax.f32 %v736, 0.0
      %v953 = vmax.f32 %v849, 0.0
      %v954 = vmax.f32 %v513, 0.0
      %v955 = vmax.f32 %v626, 0.0
      %v956 = vmax.f32 %v739, 0.0
      %v957 = vmax.f32 %v852, 0.0
      %v958 = vmax.f32 %v516, 0.0
      %v959 = vmax.f32 %v629, 0.0
      %v960 = vmax.f32 %v742, 0.0
      %v961 = vmax.f32 %v855, 0.0
      %v962 = vmax.f32 %v519, 0.0
      %v963 = vmax.f32 %v632, 0.0
      %v964 = vmax.f32 %v745, 0.0
      %v965 = vmax.f32 %v858, 0.0
      %v966 = vmax.f32 %v522, 0.0
      %v967 = vmax.f32 %v635, 0.0
      %v968 = vmax.f32 %v748, 0.0
      %v969 = vmax.f32 %v861, 0.0
      %v970 = vmax.f32 %v525, 0.0
      %v971 = vmax.f32 %v638, 0.0
      %v972 = vmax.f32 %v751, 0.0
      %v973 = vmax.f32 %v864, 0.0
      %v974 = vmax.f32 %v528, 0.0
      %v975 = vmax.f32 %v641, 0.0
      %v976 = vmax.f32 %v754, 0.0
      %v977 = vmax.f32 %v867, 0.0
      %v978 = vmax.f32 %v531, 0.0
      %v979 = vmax.f32 %v644, 0.0
      %v980 = vmax.f32 %v757, 0.0
      %v981 = vmax.f32 %v870, 0.0
      %v982 = vmax.f32 %v534, 0.0
      %v983 = vmax.f32 %v647, 0.0
      %v984 = vmax.f32 %v760, 0.0
      %v985 = vmax.f32 %v873, 0.0
      %v986 = vmax.f32 %v537, 0.0
      %v987 = vmax.f32 %v650, 0.0
      %v988 = vmax.f32 %v763, 0.0
      %v989 = vmax.f32 %v876, 0.0
      %v990 = vmax.f32 %v540, 0.0
      %v991 = vmax.f32 %v653, 0.0
      %v992 = vmax.f32 %v766, 0.0
      %v993 = vmax.f32 %v879, 0.0
      %v994 = vmax.f32 %v543, 0.0
      %v995 = vmax.f32 %v656, 0.0
      %v996 = vmax.f32 %v769, 0.0
      %v997 = vmax.f32 %v882, 0.0
      %v998 = vmax.f32 %v546, 0.0
      %v999 = vmax.f32 %v659, 0.0
      %v1000 = vmax.f32 %v772, 0.0
      %v1001 = vmax.f32 %v885, 0.0
      %v1002 = vmax.f32 %v549, 0.0
      %v1003 = vmax.f32 %v662, 0.0
      %v1004 = vmax.f32 %v775, 0.0
      %v1005 = vmax.f32 %v888, 0.0
      %v1006 = vmax.f32 %v552, 0.0
      %v1007 = vmax.f32 %v665, 0.0
      %v1008 = vmax.f32 %v778, 0.0
      %v1009 = vmax.f32 %v891, 0.0
      %v1010 = vmax.f32 %v555, 0.0
      %v1011 = vmax.f32 %v668, 0.0
      %v1012 = vmax.f32 %v781, 0.0
      %v1013 = vmax.f32 %v894, 0.0
      %v1014 = vmax.f32 %v558, 0.0
      %v1015 = vmax.f32 %v671, 0.0
      %v1016 = vmax.f32 %v784, 0.0
      %v1017 = vmax.f32 %v897, 0.0
      %v1018 = vmax.f32 %v561, 0.0
      %v1019 = vmax.f32 %v674, 0.0
      %v1020 = vmax.f32 %v787, 0.0
      %v1021 = vmax.f32 %v900, 0.0
      %v1022 = vmax.f32 %v564, 0.0
      %v1023 = vmax.f32 %v677, 0.0
      %v1024 = vmax.f32 %v790, 0.0
      %v1025 = vmax.f32 %v903, 0.0
      %v1026 = vmax.f32 %v567, 0.0
      %v1027 = vmax.f32 %v680, 0.0
      %v1028 = vmax.f32 %v793, 0.0
      %v1029 = vmax.f32 %v906, 0.0
      %v1030 = vmax.f32 %v570, 0.0
      %v1031 = vmax.f32 %v683, 0.0
      %v1032 = vmax.f32 %v796, 0.0
      %v1033 = vmax.f32 %v909, 0.0
      %v1034 = vmax.f32 %v573, 0.0
      %v1035 = vmax.f32 %v686, 0.0
      %v1036 = vmax.f32 %v799, 0.0
      %v1037 = vmax.f32 %v912, 0.0
      %v1038 = vmax.f32 %v576, 0.0
      %v1039 = vmax.f32 %v689, 0.0
      %v1040 = vmax.f32 %v802, 0.0
      %v1041 = vmax.f32 %v915, 0.0
      %v1042 = vmax.f32 %v579, 0.0
      %v1043 = vmax.f32 %v692, 0.0
      %v1044 = vmax.f32 %v805, 0.0
      %v1045 = vmax.f32 %v918, 0.0
      %v1046 = vmax.f32 %v582, 0.0
      %v1047 = vmax.f32 %v695, 0.0
      %v1048 = vmax.f32 %v808, 0.0
      %v1049 = vmax.f32 %v921, 0.0
      %v1050 = vmax.f32 %v585, 0.0
      %v1051 = vmax.f32 %v698, 0.0
      %v1052 = vmax.f32 %v811, 0.0
      %v1053 = vmax.f32 %v924, 0.0
      %v1054 = vadd.f32 %v926, %v930
      %v1055 = vadd.f32 %v1054, %v934
      %v1056 = vadd.f32 %v1055, %v938
      %v1057 = vadd.f32 %v1056, %v942
      %v1058 = vadd.f32 %v1057, %v946
      %v1059 = vadd.f32 %v1058, %v950
      %v1060 = vadd.f32 %v1059, %v954
      %v1061 = vadd.f32 %v1060, %v958
      %v1062 = vadd.f32 %v1061, %v962
      %v1063 = vadd.f32 %v1062, %v966
      %v1064 = vadd.f32 %v1063, %v970
      %v1065 = vadd.f32 %v1064, %v974
      %v1066 = vadd.f32 %v1065, %v978
      %v1067 = vadd.f32 %v1066, %v982
      %v1068 = vadd.f32 %v1067, %v986
      %v1069 = vadd.f32 %v1068, %v990
      %v1070 = vadd.f32 %v1069, %v994
      %v1071 = vadd.f32 %v1070, %v998
      %v1072 = vadd.f32 %v1071, %v1002
      %v1073 = vadd.f32 %v1072, %v1006
      %v1074 = vadd.f32 %v1073, %v1010
      %v1075 = vadd.f32 %v1074, %v1014
      %v1076 = vadd.f32 %v1075, %v1018
      %v1077 = vadd.f32 %v1076, %v1022
      %v1078 = vadd.f32 %v1077, %v1026
      %v1079 = vadd.f32 %v1078, %v1030
      %v1080 = vadd.f32 %v1079, %v1034
      %v1081 = vadd.f32 %v1080, %v1038
      %v1082 = vadd.f32 %v1081, %v1042
      %v1083 = vadd.f32 %v1082, %v1046
      %v1084 = vadd.f32 %v1083, %v1050
      %v1085 = vrot.slane %v1084, 4
      %v1086 = vadd.f32 %v1084, %v1085
      %v1087 = vrot.slane %v1086, 2
      %v1088 = vadd.f32 %v1086, %v1087
      %v1089 = vrot.slane %v1088, 1
      %v1090 = vadd.f32 %v1088, %v1089
      %v1091 = vadd.f32 %v927, %v931
      %v1092 = vadd.f32 %v1091, %v935
      %v1093 = vadd.f32 %v1092, %v939
      %v1094 = vadd.f32 %v1093, %v943
      %v1095 = vadd.f32 %v1094, %v947
      %v1096 = vadd.f32 %v1095, %v951
      %v1097 = vadd.f32 %v1096, %v955
      %v1098 = vadd.f32 %v1097, %v959
      %v1099 = vadd.f32 %v1098, %v963
      %v1100 = vadd.f32 %v1099, %v967
      %v1101 = vadd.f32 %v1100, %v971
      %v1102 = vadd.f32 %v1101, %v975
      %v1103 = vadd.f32 %v1102, %v979
      %v1104 = vadd.f32 %v1103, %v983
      %v1105 = vadd.f32 %v1104, %v987
      %v1106 = vadd.f32 %v1105, %v991
      %v1107 = vadd.f32 %v1106, %v995
      %v1108 = vadd.f32 %v1107, %v999
      %v1109 = vadd.f32 %v1108, %v1003
      %v1110 = vadd.f32 %v1109, %v1007
      %v1111 = vadd.f32 %v1110, %v1011
      %v1112 = vadd.f32 %v1111, %v1015
      %v1113 = vadd.f32 %v1112, %v1019
      %v1114 = vadd.f32 %v1113, %v1023
      %v1115 = vadd.f32 %v1114, %v1027
      %v1116 = vadd.f32 %v1115, %v1031
      %v1117 = vadd.f32 %v1116, %v1035
      %v1118 = vadd.f32 %v1117, %v1039
      %v1119 = vadd.f32 %v1118, %v1043
      %v1120 = vadd.f32 %v1119, %v1047
      %v1121 = vadd.f32 %v1120, %v1051
      %v1122 = vrot.slane %v1121, 4
      %v1123 = vadd.f32 %v1121, %v1122
      %v1124 = vrot.slane %v1123, 2
      %v1125 = vadd.f32 %v1123, %v1124
      %v1126 = vrot.slane %v1125, 1
      %v1127 = vadd.f32 %v1125, %v1126
      %v1128 = vadd.f32 %v928, %v932
      %v1129 = vadd.f32 %v1128, %v936
      %v1130 = vadd.f32 %v1129, %v940
      %v1131 = vadd.f32 %v1130, %v944
      %v1132 = vadd.f32 %v1131, %v948
      %v1133 = vadd.f32 %v1132, %v952
      %v1134 = vadd.f32 %v1133, %v956
      %v1135 = vadd.f32 %v1134, %v960
      %v1136 = vadd.f32 %v1135, %v964
      %v1137 = vadd.f32 %v1136, %v968
      %v1138 = vadd.f32 %v1137, %v972
      %v1139 = vadd.f32 %v1138, %v976
      %v1140 = vadd.f32 %v1139, %v980
      %v1141 = vadd.f32 %v1140, %v984
      %v1142 = vadd.f32 %v1141, %v988
      %v1143 = vadd.f32 %v1142, %v992
      %v1144 = vadd.f32 %v1143, %v996
      %v1145 = vadd.f32 %v1144, %v1000
      %v1146 = vadd.f32 %v1145, %v1004
      %v1147 = vadd.f32 %v1146, %v1008
      %v1148 = vadd.f32 %v1147, %v1012
      %v1149 = vadd.f32 %v1148, %v1016
      %v1150 = vadd.f32 %v1149, %v1020
      %v1151 = vadd.f32 %v1150, %v1024
      %v1152 = vadd.f32 %v1151, %v1028
      %v1153 = vadd.f32 %v1152, %v1032
      %v1154 = vadd.f32 %v1153, %v1036
      %v1155 = vadd.f32 %v1154, %v1040
      %v1156 = vadd.f32 %v1155, %v1044
      %v1157 = vadd.f32 %v1156, %v1048
      %v1158 = vadd.f32 %v1157, %v1052
      %v1159 = vrot.slane %v1158, 4
      %v1160 = vadd.f32 %v1158, %v1159
      %v1161 = vrot.slane %v1160, 2
      %v1162 = vadd.f32 %v1160, %v1161
      %v1163 = vrot.slane %v1162, 1
      %v1164 = vadd.f32 %v1162, %v1163
      %v1165 = vadd.f32 %v929, %v933
      %v1166 = vadd.f32 %v1165, %v937
      %v1167 = vadd.f32 %v1166, %v941
      %v1168 = vadd.f32 %v1167, %v945
      %v1169 = vadd.f32 %v1168, %v949
      %v1170 = vadd.f32 %v1169, %v953
      %v1171 = vadd.f32 %v1170, %v957
      %v1172 = vadd.f32 %v1171, %v961
      %v1173 = vadd.f32 %v1172, %v965
      %v1174 = vadd.f32 %v1173, %v969
      %v1175 = vadd.f32 %v1174, %v973
      %v1176 = vadd.f32 %v1175, %v977
      %v1177 = vadd.f32 %v1176, %v981
      %v1178 = vadd.f32 %v1177, %v985
      %v1179 = vadd.f32 %v1178, %v989
      %v1180 = vadd.f32 %v1179, %v993
      %v1181 = vadd.f32 %v1180, %v997
      %v1182 = vadd.f32 %v1181, %v1001
      %v1183 = vadd.f32 %v1182, %v1005
      %v1184 = vadd.f32 %v1183, %v1009
      %v1185 = vadd.f32 %v1184, %v1013
      %v1186 = vadd.f32 %v1185, %v1017
      %v1187 = vadd.f32 %v1186, %v1021
      %v1188 = vadd.f32 %v1187, %v1025
      %v1189 = vadd.f32 %v1188, %v1029
      %v1190 = vadd.f32 %v1189, %v1033
      %v1191 = vadd.f32 %v1190, %v1037
      %v1192 = vadd.f32 %v1191, %v1041
      %v1193 = vadd.f32 %v1192, %v1045
      %v1194 = vadd.f32 %v1193, %v1049
      %v1195 = vadd.f32 %v1194, %v1053
      %v1196 = vrot.slane %v1195, 4
      %v1197 = vadd.f32 %v1195, %v1196
      %v1198 = vrot.slane %v1197, 2
      %v1199 = vadd.f32 %v1197, %v1198
      %v1200 = vrot.slane %v1199, 1
      %v1201 = vadd.f32 %v1199, %v1200
      %v1202 = vrcp.pop 256.0
      %v1203 = vmul.f32 256.0, %v1202
      %v1204 = vsub.f32 1.0, %v1203
      %v1205 = vmul.f32 %v1202, %v1204
      %v1206 = vadd.f32 %v1202, %v1205
      %vm1207 = vweird.f32 %v1202
      %v1208 = vsel %vm1207, %v1202, %v1206
      %v1209 = vmul.f32 %v1090, %v1208
      %v1210 = vmul.f32 %v1127, %v1208
      %v1211 = vmul.f32 %v1164, %v1208
      %v1212 = vmul.f32 %v1201, %v1208
      %v1213 = vld [vmem:[%s302] sm:$0xff]
      %v1214 = vld [vmem:[%s302 + $0x8] sm:$0xff]
      %v1215 = vld [vmem:[%s302 + $0x10] sm:$0xff]
      %v1216 = vld [vmem:[%s302 + $0x18] sm:$0xff]
      %v1217 = vld [vmem:[%s302 + $0x20] sm:$0xff]
      %v1218 = vld [vmem:[%s302 + $0x28] sm:$0xff]
      %v1219 = vld [vmem:[%s302 + $0x30] sm:$0xff]
      %v1220 = vld [vmem:[%s302 + $0x38] sm:$0xff]
      %v1221 = vld [vmem:[%s302 + $0x40] sm:$0xff]
      %v1222 = vld [vmem:[%s302 + $0x48] sm:$0xff]
      %v1223 = vld [vmem:[%s302 + $0x50] sm:$0xff]
      %v1224 = vld [vmem:[%s302 + $0x58] sm:$0xff]
      %v1225 = vld [vmem:[%s302 + $0x60] sm:$0xff]
      %v1226 = vld [vmem:[%s302 + $0x68] sm:$0xff]
      %v1227 = vld [vmem:[%s302 + $0x70] sm:$0xff]
      %v1228 = vld [vmem:[%s302 + $0x78] sm:$0xff]
      %v1229 = vld [vmem:[%s302 + $0x80] sm:$0xff]
      %v1230 = vld [vmem:[%s302 + $0x88] sm:$0xff]
      %v1231 = vld [vmem:[%s302 + $0x90] sm:$0xff]
      %v1232 = vld [vmem:[%s302 + $0x98] sm:$0xff]
      %v1233 = vld [vmem:[%s302 + $0xa0] sm:$0xff]
      %v1234 = vld [vmem:[%s302 + $0xa8] sm:$0xff]
      %v1235 = vld [vmem:[%s302 + $0xb0] sm:$0xff]
      %v1236 = vld [vmem:[%s302 + $0xb8] sm:$0xff]
      %v1237 = vld [vmem:[%s302 + $0xc0] sm:$0xff]
      %v1238 = vld [vmem:[%s302 + $0xc8] sm:$0xff]
      %v1239 = vld [vmem:[%s302 + $0xd0] sm:$0xff]
      %v1240 = vld [vmem:[%s302 + $0xd8] sm:$0xff]
      %v1241 = vld [vmem:[%s302 + $0xe0] sm:$0xff]
      %v1242 = vld [vmem:[%s302 + $0xe8] sm:$0xff]
      %v1243 = vld [vmem:[%s302 + $0xf0] sm:$0xff]
      %v1244 = vld [vmem:[%s302 + $0xf8] sm:$0xff]
      %v1245 = vld [vmem:[%s302 + $0x100] sm:$0xff]
      %v1246 = vld [vmem:[%s302 + $0x108] sm:$0xff]
      %v1247 = vld [vmem:[%s302 + $0x110] sm:$0xff]
      %v1248 = vld [vmem:[%s302 + $0x118] sm:$0xff]
      %v1249 = vld [vmem:[%s302 + $0x120] sm:$0xff]
      %v1250 = vld [vmem:[%s302 + $0x128] sm:$0xff]
      %v1251 = vld [vmem:[%s302 + $0x130] sm:$0xff]
      %v1252 = vld [vmem:[%s302 + $0x138] sm:$0xff]
      %v1253 = vld [vmem:[%s302 + $0x140] sm:$0xff]
      %v1254 = vld [vmem:[%s302 + $0x148] sm:$0xff]
      %v1255 = vld [vmem:[%s302 + $0x150] sm:$0xff]
      %v1256 = vld [vmem:[%s302 + $0x158] sm:$0xff]
      %v1257 = vld [vmem:[%s302 + $0x160] sm:$0xff]
      %v1258 = vld [vmem:[%s302 + $0x168] sm:$0xff]
      %v1259 = vld [vmem:[%s302 + $0x170] sm:$0xff]
      %v1260 = vld [vmem:[%s302 + $0x178] sm:$0xff]
      %v1261 = vld [vmem:[%s302 + $0x180] sm:$0xff]
      %v1262 = vld [vmem:[%s302 + $0x188] sm:$0xff]
      %v1263 = vld [vmem:[%s302 + $0x190] sm:$0xff]
      %v1264 = vld [vmem:[%s302 + $0x198] sm:$0xff]
      %v1265 = vld [vmem:[%s302 + $0x1a0] sm:$0xff]
      %v1266 = vld [vmem:[%s302 + $0x1a8] sm:$0xff]
      %v1267 = vld [vmem:[%s302 + $0x1b0] sm:$0xff]
      %v1268 = vld [vmem:[%s302 + $0x1b8] sm:$0xff]
      %v1269 = vld [vmem:[%s302 + $0x1c0] sm:$0xff]
      %v1270 = vld [vmem:[%s302 + $0x1c8] sm:$0xff]
      %v1271 = vld [vmem:[%s302 + $0x1d0] sm:$0xff]
      %v1272 = vld [vmem:[%s302 + $0x1d8] sm:$0xff]
      %v1273 = vld [vmem:[%s302 + $0x1e0] sm:$0xff]
      %v1274 = vld [vmem:[%s302 + $0x1e8] sm:$0xff]
      %v1275 = vld [vmem:[%s302 + $0x1f0] sm:$0xff]
      %v1276 = vld [vmem:[%s302 + $0x1f8] sm:$0xff]
      %1277 = vmatpush.msra.mxu0 %v1228
      %1278 = vmatpush.msra.mxu0 %v1227
      %1279 = vmatpush.msra.mxu0 %v1226
      %1280 = vmatpush.msra.mxu0 %v1225
      %1281 = vmatpush.msra.mxu0 %v1224
      %1282 = vmatpush.msra.mxu0 %v1223
      %1283 = vmatpush.msra.mxu0 %v1222
      %1284 = vmatpush.msra.mxu0 %v1221
      %1285 = vmatpush.msra.mxu0 %v1220
      %1286 = vmatpush.msra.mxu0 %v1219
      %1287 = vmatpush.msra.mxu0 %v1218
      %1288 = vmatpush.msra.mxu0 %v1217
      %1289 = vmatpush.msra.mxu0 %v1216
      %1290 = vmatpush.msra.mxu0 %v1215
      %1291 = vmatpush.msra.mxu0 %v1214
      %1292 = vmatpush.msra.mxu0 %v1213
      %1293 = vmatmul.f32.gmra.mxu0 %v1209
      %v1294 = vpop.f32.mrf.mxu0
      %v1295 = vadd.f32 0.0, %v1294
      %1296 = vdwg.mxu0
      %1297 = vmatpush.msra.mxu0 %v1244
      %1298 = vmatpush.msra.mxu0 %v1243
      %1299 = vmatpush.msra.mxu0 %v1242
      %1300 = vmatpush.msra.mxu0 %v1241
      %1301 = vmatpush.msra.mxu0 %v1240
      %1302 = vmatpush.msra.mxu0 %v1239
      %1303 = vmatpush.msra.mxu0 %v1238
      %1304 = vmatpush.msra.mxu0 %v1237
      %1305 = vmatpush.msra.mxu0 %v1236
      %1306 = vmatpush.msra.mxu0 %v1235
      %1307 = vmatpush.msra.mxu0 %v1234
      %1308 = vmatpush.msra.mxu0 %v1233
      %1309 = vmatpush.msra.mxu0 %v1232
      %1310 = vmatpush.msra.mxu0 %v1231
      %1311 = vmatpush.msra.mxu0 %v1230
      %1312 = vmatpush.msra.mxu0 %v1229
      %1313 = vmatmul.f32.gmra.mxu0 %v1210
      %v1314 = vpop.f32.mrf.mxu0
      %v1315 = vadd.f32 %v1295, %v1314
      %1316 = vdwg.mxu0
      %1317 = vmatpush.msra.mxu0 %v1260
      %1318 = vmatpush.msra.mxu0 %v1259
      %1319 = vmatpush.msra.mxu0 %v1258
      %1320 = vmatpush.msra.mxu0 %v1257
      %1321 = vmatpush.msra.mxu0 %v1256
      %1322 = vmatpush.msra.mxu0 %v1255
      %1323 = vmatpush.msra.mxu0 %v1254
      %1324 = vmatpush.msra.mxu0 %v1253
      %1325 = vmatpush.msra.mxu0 %v1252
      %1326 = vmatpush.msra.mxu0 %v1251
      %1327 = vmatpush.msra.mxu0 %v1250
      %1328 = vmatpush.msra.mxu0 %v1249
      %1329 = vmatpush.msra.mxu0 %v1248
      %1330 = vmatpush.msra.mxu0 %v1247
      %1331 = vmatpush.msra.mxu0 %v1246
      %1332 = vmatpush.msra.mxu0 %v1245
      %1333 = vmatmul.f32.gmra.mxu0 %v1211
      %v1334 = vpop.f32.mrf.mxu0
      %v1335 = vadd.f32 %v1315, %v1334
      %1336 = vdwg.mxu0
      %1337 = vmatpush.msra.mxu0 %v1276
      %1338 = vmatpush.msra.mxu0 %v1275
      %1339 = vmatpush.msra.mxu0 %v1274
      %1340 = vmatpush.msra.mxu0 %v1273
      %1341 = vmatpush.msra.mxu0 %v1272
      %1342 = vmatpush.msra.mxu0 %v1271
      %1343 = vmatpush.msra.mxu0 %v1270
      %1344 = vmatpush.msra.mxu0 %v1269
      %1345 = vmatpush.msra.mxu0 %v1268
      %1346 = vmatpush.msra.mxu0 %v1267
      %1347 = vmatpush.msra.mxu0 %v1266
      %1348 = vmatpush.msra.mxu0 %v1265
      %1349 = vmatpush.msra.mxu0 %v1264
      %1350 = vmatpush.msra.mxu0 %v1263
      %1351 = vmatpush.msra.mxu0 %v1262
      %1352 = vmatpush.msra.mxu0 %v1261
      %1353 = vmatmul.f32.gmra.mxu0 %v1212
      %v1354 = vpop.f32.mrf.mxu0
      %v1355 = vadd.f32 %v1335, %v1354
      %1356 = vdwg.mxu0
      %p1357 = scmp.eq.s32.totalorder %s23, 0
      // Predicated region
      $region41: #{concat_network_forward.3} parent=39 // pred_check
        %p1358 = pneg %p1357
      $region42: #{concat_network_forward.3} parent=39 // pred_check_branch
        %1360 = sbr.rel (%p1358) target = $region44
      $region43: #{concat_network_forward.3} parent=39 // pred_region
        %v1361 = vld [vmem:[#allocation2] sm:$0x1]
        %vm1362 = vcmask 0
        %1363 = vst.msk [vmem:[%s305] sm:$0x1] %vm1362, %v1361
      $region44: #{concat_network_forward.3} parent=39 // pred_fallthru
        _
      %v1364 = vld [vmem:[%s305] sm:$0x1]
      %v1365 = vadd.f32 %v1364, %v1355
      %vm1366 = vcmask 0
      %1367 = vst.msk [vmem:[%s305] sm:$0x1] %vm1366, %v1365
      %p1368 = scmp.lt.s32.totalorder %s22, 1
      %s1369 = scalar_select %p1368, %s22, 1
      %s1370 = scalar_lea.vmem %s5, %s1369
      // Predicated region
      $region45: #{concat_network_forward.3} parent=39 // pred_check
        %p1371 = pneg %p175
      $region46: #{concat_network_forward.3} parent=39 // pred_check_branch
        %1373 = sbr.rel (%p1371) target = $region48
      $region47: #{concat_network_forward.3} parent=39 // pred_region
        _
      $region48: #{concat_network_forward.3} parent=39 // pred_fallthru
        _
    $region40: #{concat_network_forward.3} parent=5 // pred_fallthru
      _
    %p1374 = scmp.le.s32.totalorder 2, %s13
    // Predicated region
    $region49: #{concat_network_forward.3} parent=5 // pred_check
      %p1375 = pneg %p1374
    $region50: #{concat_network_forward.3} parent=5 // pred_check_branch
      %1377 = sbr.rel (%p1375) target = $region52
    $region51: #{concat_network_forward.3} parent=5 // pred_region
      %s1378 = ssub.s32 %s13, 2
      // Predicated region
      $region53: #{concat_network_forward.3} parent=51 // pred_check
        %p1379 = pneg %p181
      $region54: #{concat_network_forward.3} parent=51 // pred_check_branch
        %1381 = sbr.rel (%p1379) target = $region56
      $region55: #{concat_network_forward.3} parent=51 // pred_region
        %p1382 = scmp.lt.s32.totalorder %s24, 1
        %s1383 = scalar_select %p1382, %s24, 1
        %s1384 = scalar_lea.vmem %s5, %s1383
      $region56: #{concat_network_forward.3} parent=51 // pred_fallthru
        _
    $region52: #{concat_network_forward.3} parent=5 // pred_fallthru
      _
  $region6: #{concat_network_forward.3} parent=0 // loop_footer
    %s17 = sadd.s32 1, %s13
  $region7: #{concat_network_forward.3} parent=0 // loop_footer_branch
    %12 = sbr.rel target = $region3
  $region8: #{concat_network_forward.3} parent=0 // loop_exit
    _

</llo_original>
